<compile_context>
chip_gen: v6e
topology: v6e:2x2x1
jax: 0.10.0
libtpu: 0.0.40
codegen_flags: <defaults>
</compile_context>

<pallas_src>
import jax
import jax.numpy as jnp
from jax import lax
from jax.experimental import pallas as pl
from jax.experimental.pallas import tpu as pltpu


C = 64            # encoder output channels (channels[0]); crm is achieve_crm(64)
KIN = 3 * 4 * 4   # per-frame patch-embed contraction dim (Cin * kh * kw) = 48
KCAT = 2 * KIN    # concatenated two-frame contraction dim = 96
NENC = 2 * C      # block-diagonal encoder output width = 128
NCLS = 2          # classifier output channels
NCLS_SUB = 8      # sublane-padded classifier rows inside the kernel


# --------------------------------------------------------------------------
# Fused kernel: one M-tile of the whole post-patchify GeSANet pipeline.
# --------------------------------------------------------------------------
def _fused_kernel(xc_ref, wbd_ref, wpmm2_ref, wdec_ref, wcrm_ref, wclst_ref,
                  p_ref, o_ref):
    f32 = jnp.float32

    # Packed per-channel vectors (one constant stream instead of seven).
    bcat = p_ref[0:1, :]            # (1, 128)  [be0 | be1]
    bpmm = p_ref[1:2, 0:C]          # (1, 64)
    bdec = p_ref[2:3, 0:C]
    bcrm = p_ref[3:4, 0:C]
    bns = p_ref[4:5, 0:C]           # folded eval-BN scale
    bnt = p_ref[5:6, 0:C]           # folded eval-BN shift

    # Both encoders in one block-diagonal matmul (bf16 x bf16 -> f32).
    r = jnp.maximum(
        jnp.dot(xc_ref[...], wbd_ref[...], preferred_element_type=f32)
        + bcat, 0.0)                                       # (tm, 128) = [f0 | f1]

    # pmm on feats = f0 + f1, folded: r @ [Wpmm; Wpmm].
    fm = jnp.maximum(
        jnp.dot(r, wpmm2_ref[...], preferred_element_type=f32) + bpmm, 0.0)

    # decoder (1x1 conv).
    pred1 = jnp.dot(fm, wdec_ref[...], preferred_element_type=f32) + bdec

    # crm (1x1 conv + ReLU) and residual.
    reco = jnp.maximum(
        jnp.dot(pred1, wcrm_ref[...], preferred_element_type=f32) + bcrm, 0.0)
    pred2 = pred1 + reco

    # Eval-BN affine + ReLU on both branches; shared linear classifier
    # distributes over the sum: cls(a1) + cls(a2) = (a1 + a2) @ Wcls + 2*bcls
    # (the constant 2*bcls is added host-side on the tiny low-res map).
    a1 = jnp.maximum(pred1 * bns + bnt, 0.0)
    a2 = jnp.maximum(pred2 * bns + bnt, 0.0)
    s = a1 + a2                                            # (tm, C)

    # Classifier, produced directly in (class, row) orientation so the only
    # HBM store of the kernel is lane-dense over the row axis.
    zt = lax.dot_general(wclst_ref[...], s,
                         dimension_numbers=(((1,), (1,)), ((), ())),
                         preferred_element_type=f32)       # (8, tm)
    o_ref[...] = zt[:NCLS, :].astype(o_ref.dtype)          # (2, tm)


# --------------------------------------------------------------------------
# Host-side helpers.
# --------------------------------------------------------------------------
def _patchify(img):
    """NCHW (B, 3, H, W) -> im2col'd non-overlapping 4x4 patches (M, 48)."""
    B, Cin, H, W = img.shape
    Hp, Wp = H // 4, W // 4
    x = img.reshape(B, Cin, Hp, 4, Wp, 4)
    x = jnp.transpose(x, (0, 2, 4, 1, 3, 5))          # (B, Hp, Wp, Cin, 4, 4)
    return x.reshape(B * Hp * Wp, Cin * 16)


def _pick_tm(m):
    """Largest multiple-of-128 divisor of m (<=512), preferring grid >= 4 (>=2)."""
    cands = [t for t in range(128, min(m, 512) + 1, 128) if m % t == 0]
    for min_grid in (4, 2, 1):
        ok = [t for t in cands if m // t >= min_grid]
        if ok:
            return max(ok)
    return 128


def init_params(key):
    ks = jax.random.split(key, 16)

    def w(k, shape, scale):
        return jax.random.normal(k, shape, jnp.float32) * scale

    p = {
        "We0": w(ks[0], (KIN, C), KIN ** -0.5),
        "be0": w(ks[1], (1, C), 0.1),
        "We1": w(ks[2], (KIN, C), KIN ** -0.5),
        "be1": w(ks[3], (1, C), 0.1),
        "Wpmm": w(ks[4], (C, C), C ** -0.5),
        "bpmm": w(ks[5], (1, C), 0.1),
        "Wdec": w(ks[6], (C, C), C ** -0.5),
        "bdec": w(ks[7], (1, C), 0.1),
        "Wcrm": w(ks[8], (C, C), C ** -0.5),
        "bcrm": w(ks[9], (1, C), 0.1),
        "bn_gamma": 1.0 + 0.1 * jax.random.normal(ks[10], (1, C), jnp.float32),
        "bn_beta": 0.1 * jax.random.normal(ks[11], (1, C), jnp.float32),
        "bn_mean": 0.1 * jax.random.normal(ks[12], (1, C), jnp.float32),
        "bn_var": jnp.abs(1.0 + 0.1 * jax.random.normal(ks[13], (1, C),
                                                        jnp.float32)),
        "Wcls": w(ks[14], (C, NCLS), C ** -0.5),
        "bcls": w(ks[15], (1, NCLS), 0.1),
    }
    return p


@jax.jit
def gesanet_forward(img_t0, img_t1, params):
    B, Cin, H, W = img_t0.shape
    assert Cin == 3 and H % 4 == 0 and W % 4 == 0
    Hp, Wp = H // 4, W // 4
    M = B * Hp * Wp

    # Trace-time fold of eval-mode BatchNorm into a per-channel affine.
    eps = 1e-5
    bns = params["bn_gamma"] / jnp.sqrt(params["bn_var"] + eps)
    bnt = params["bn_beta"] - params["bn_mean"] * bns

    # One fused pass: patchify both frames, concat on K, cast to bf16.
    xc = jnp.concatenate([_patchify(img_t0), _patchify(img_t1)],
                         axis=-1).astype(jnp.bfloat16)        # (M, 96)

    # Round M up to a multiple of 128 (zero rows -> garbage rows, sliced off).
    Mp = ((M + 127) // 128) * 128
    if Mp != M:
        xc = jnp.pad(xc, ((0, Mp - M), (0, 0)))

    # Block-diagonal encoder weight (bf16) and folded downstream weights (f32).
    z48 = jnp.zeros((KIN, C), jnp.float32)
    wbd = jnp.concatenate(
        [jnp.concatenate([params["We0"], z48], axis=1),
         jnp.concatenate([z48, params["We1"]], axis=1)],
        axis=0).astype(jnp.bfloat16)                          # (96, 128)
    wpmm2 = jnp.concatenate([params["Wpmm"], params["Wpmm"]], axis=0)  # (128, 64)
    wclst = jnp.pad(params["Wcls"].T, ((0, NCLS_SUB - NCLS), (0, 0)))  # (8, 64)

    # Single packed (8, 128) constant carrying every per-channel vector.
    P = jnp.zeros((NCLS_SUB, NENC), jnp.float32)
    P = P.at[0, :].set(jnp.concatenate([params["be0"][0], params["be1"][0]]))
    P = P.at[1, :C].set(params["bpmm"][0])
    P = P.at[2, :C].set(params["bdec"][0])
    P = P.at[3, :C].set(params["bcrm"][0])
    P = P.at[4, :C].set(bns[0])
    P = P.at[5, :C].set(bnt[0])

    tm = _pick_tm(Mp)
    grid = (Mp // tm,)

    def const_spec(shape):
        return pl.BlockSpec(shape, lambda i: (0, 0))          # VMEM-resident

    act_spec = pl.BlockSpec((tm, KCAT), lambda i: (i, 0))
    out_spec = pl.BlockSpec((NCLS, tm), lambda i: (0, i))     # (2, M) lane-dense

    flops = 2 * Mp * (KCAT * NENC + NENC * C + C * C + C * C + NCLS_SUB * C)
    bytes_accessed = (Mp * KCAT * 2 + NCLS * Mp * 4
                      + KCAT * NENC * 2 + NENC * C * 4 + 2 * C * C * 4
                      + NCLS_SUB * C * 4 + NCLS_SUB * NENC * 4)
    cost = pl.CostEstimate(flops=flops, transcendentals=0,
                           bytes_accessed=bytes_accessed)

    out_lr = pl.pallas_call(
        _fused_kernel,
        out_shape=jax.ShapeDtypeStruct((NCLS, Mp), jnp.float32),
        grid_spec=pltpu.PrefetchScalarGridSpec(
            num_scalar_prefetch=0,
            grid=grid,
            in_specs=[
                act_spec,                        # concatenated patches (bf16)
                const_spec((KCAT, NENC)),        # block-diag encoder weight
                const_spec((NENC, C)),           # [Wpmm; Wpmm]
                const_spec((C, C)),              # Wdec
                const_spec((C, C)),              # Wcrm
                const_spec((NCLS_SUB, C)),       # Wcls^T (padded to 8 rows)
                const_spec((NCLS_SUB, NENC)),    # packed per-channel vectors
            ],
            out_specs=out_spec,
        ),
        compiler_params=pltpu.CompilerParams(
            dimension_semantics=("parallel",),
        ),
        cost_estimate=cost,
    )(xc, wbd, wpmm2, params["Wdec"], params["Wcrm"], wclst, P)

    # Tiny epilogue on the (2, M) low-res map: folded classifier bias, then
    # both nearest x2 upsamples (commuted to the end), then NCHW layout.
    z = out_lr[:, :M].reshape(NCLS, B, Hp, Wp)
    z = z + 2.0 * params["bcls"].reshape(NCLS, 1, 1, 1)
    z = jnp.repeat(jnp.repeat(z, 4, axis=2), 4, axis=3)       # (2, B, H, W)
    return jnp.transpose(z, (1, 0, 2, 3))                     # (B, 2, H, W)


# --------------------------------------------------------------------------
# Pure-JAX reference mirroring the original PyTorch forward op-for-op.
# --------------------------------------------------------------------------
def gesanet_reference(img_t0, img_t1, params):
    B, _, H, W = img_t0.shape
    Hp, Wp = H // 4, W // 4
    eps = 1e-5
    bns = params["bn_gamma"] / jnp.sqrt(params["bn_var"] + eps)
    bnt = params["bn_beta"] - params["bn_mean"] * bns

    def encoder(img, Wc, b):
        x = _patchify(img)                                # (M, 48)
        return jnp.maximum(x @ Wc + b, 0.0)               # (M, 64)

    def up2(x):                                           # NHWC nearest x2
        return jnp.repeat(jnp.repeat(x, 2, axis=1), 2, axis=2)

    f0 = encoder(img_t0, params["We0"], params["be0"])
    f1 = encoder(img_t1, params["We1"], params["be1"])
    feats = f0 + f1
    fm = jnp.maximum(feats @ params["Wpmm"] + params["bpmm"], 0.0)
    pred1 = fm @ params["Wdec"] + params["bdec"]

    def head(pred_flat):   # upsample -> bn -> upsample -> relu -> classifier
        x = pred_flat.reshape(B, Hp, Wp, C)
        x = up2(x)
        x = x * bns + bnt
        x = up2(x)
        x = jnp.maximum(x, 0.0)
        return x @ params["Wcls"] + params["bcls"]        # (B, H, W, 2)

    pre_1 = head(pred1)
    reco = jnp.maximum(pred1 @ params["Wcrm"] + params["bcrm"], 0.0)
    pred2 = pred1 + reco
    pre_2 = head(pred2) + pre_1
    return jnp.transpose(pre_2, (0, 3, 1, 2))             # NCHW


if __name__ == "__main__":
    key = jax.random.PRNGKey(0)
    kp, k0, k1 = jax.random.split(key, 3)
    params = init_params(kp)

    B, H, W = 2, 64, 64
    img_t0 = jax.random.normal(k0, (B, 3, H, W), jnp.float32)
    img_t1 = jax.random.normal(k1, (B, 3, H, W), jnp.float32)

    out = jax.block_until_ready(gesanet_forward(img_t0, img_t1, params))
    assert out.shape == (B, NCLS, H, W), out.shape

    # (1) Tight check against a reference that uses the same deliberate bf16
    #     quantization of the patches / encoder weights (verifies the kernel
    #     algebra: block-diag encoder, pmm fold, BN fold, cls distribution,
    #     upsample commutation).
    q = lambda a: a.astype(jnp.bfloat16).astype(jnp.float32)
    params_q = dict(params)
    params_q["We0"] = q(params["We0"])
    params_q["We1"] = q(params["We1"])
    ref_q = jax.block_until_ready(gesanet_reference(q(img_t0), q(img_t1), params_q))
    err_q = float(jnp.max(jnp.abs(out - ref_q)))
    if not err_q < 2e-2:
        raise AssertionError(f"kernel vs bf16-matched reference: max|diff|={err_q}")

    # (2) Loose sanity check against the full-f32 reference (headroom covers
    #     the intentional bf16 quantization of the memory-bound input stream).
    ref_f32 = jax.block_until_ready(gesanet_reference(img_t0, img_t1, params))
    err_f = float(jnp.max(jnp.abs(out - ref_f32)))
    if not err_f < 1.5e-1:
        raise AssertionError(f"kernel vs f32 reference: max|diff|={err_f}")

    print("KERNEL_OK")
</pallas_src>

<mosaic_0001>
module attributes {stable_mosaic.version = 11 : i64} {
  func.func @_fused_kernel(%arg0: i32, %arg1: memref<128x96xbf16, #tpu.memory_space<vmem>>, %arg2: memref<96x128xbf16, #tpu.memory_space<vmem>>, %arg3: memref<128x64xf32, #tpu.memory_space<vmem>>, %arg4: memref<64x64xf32, #tpu.memory_space<vmem>>, %arg5: memref<64x64xf32, #tpu.memory_space<vmem>>, %arg6: memref<8x64xf32, #tpu.memory_space<vmem>>, %arg7: memref<8x128xf32, #tpu.memory_space<vmem>>, %arg8: memref<2x128xf32, #tpu.memory_space<vmem>>) attributes {dimension_semantics = [#tpu.dimension_semantics<parallel>], iteration_bounds = array<i64: 4>, scalar_prefetch = 0 : i64, scratch_operands = 0 : i64, tpu.core_type = #tpu.core_type<tc>, window_params = [{transform_indices = @transform_0, window_bounds = array<i64: 128, 96>}, {pipeline_mode = #tpu.pipeline_mode<synchronous>, transform_indices = @transform_1, window_bounds = array<i64: 96, 128>}, {pipeline_mode = #tpu.pipeline_mode<synchronous>, transform_indices = @transform_2, window_bounds = array<i64: 128, 64>}, {pipeline_mode = #tpu.pipeline_mode<synchronous>, transform_indices = @transform_3, window_bounds = array<i64: 64, 64>}, {pipeline_mode = #tpu.pipeline_mode<synchronous>, transform_indices = @transform_4, window_bounds = array<i64: 64, 64>}, {pipeline_mode = #tpu.pipeline_mode<synchronous>, transform_indices = @transform_5, window_bounds = array<i64: 8, 64>}, {pipeline_mode = #tpu.pipeline_mode<synchronous>, transform_indices = @transform_6, window_bounds = array<i64: 8, 128>}, {transform_indices = @transform_7, window_bounds = array<i64: 2, 128>}]} {
    %c0 = arith.constant 0 : index
    %c0_0 = arith.constant 0 : index
    %0 = vector.load %arg7[%c0, %c0_0] : memref<8x128xf32, #tpu.memory_space<vmem>>, vector<1x128xf32>
    %c1 = arith.constant 1 : index
    %c0_1 = arith.constant 0 : index
    %1 = vector.load %arg7[%c1, %c0_1] : memref<8x128xf32, #tpu.memory_space<vmem>>, vector<1x64xf32>
    %c2 = arith.constant 2 : index
    %c0_2 = arith.constant 0 : index
    %2 = vector.load %arg7[%c2, %c0_2] : memref<8x128xf32, #tpu.memory_space<vmem>>, vector<1x64xf32>
    %c3 = arith.constant 3 : index
    %c0_3 = arith.constant 0 : index
    %3 = vector.load %arg7[%c3, %c0_3] : memref<8x128xf32, #tpu.memory_space<vmem>>, vector<1x64xf32>
    %c4 = arith.constant 4 : index
    %c0_4 = arith.constant 0 : index
    %4 = vector.load %arg7[%c4, %c0_4] : memref<8x128xf32, #tpu.memory_space<vmem>>, vector<1x64xf32>
    %c5 = arith.constant 5 : index
    %c0_5 = arith.constant 0 : index
    %5 = vector.load %arg7[%c5, %c0_5] : memref<8x128xf32, #tpu.memory_space<vmem>>, vector<1x64xf32>
    %c0_6 = arith.constant 0 : index
    %c0_7 = arith.constant 0 : index
    %6 = vector.load %arg1[%c0_6, %c0_7] : memref<128x96xbf16, #tpu.memory_space<vmem>>, vector<128x96xbf16>
    %c0_8 = arith.constant 0 : index
    %c0_9 = arith.constant 0 : index
    %7 = vector.load %arg2[%c0_8, %c0_9] : memref<96x128xbf16, #tpu.memory_space<vmem>>, vector<96x128xbf16>
    %cst = arith.constant dense<0.000000e+00> : vector<128x128xf32>
    %8 = tpu.matmul %6, %7, %cst {dimension_numbers = #tpu.dot_dimension_numbers<[1], [0], [0], [1], [0, 0, 1, 1], [], []>} : vector<128x96xbf16>, vector<96x128xbf16>, vector<128x128xf32> -> vector<128x128xf32>
    %9 = vector.broadcast %0 : vector<1x128xf32> to vector<128x128xf32>
    %10 = arith.addf %8, %9 : vector<128x128xf32>
    %cst_10 = arith.constant 0.000000e+00 : f32
    %11 = vector.broadcast %cst_10 : f32 to vector<128x128xf32>
    %12 = arith.maximumf %10, %11 : vector<128x128xf32>
    %c0_11 = arith.constant 0 : index
    %c0_12 = arith.constant 0 : index
    %13 = vector.load %arg3[%c0_11, %c0_12] : memref<128x64xf32, #tpu.memory_space<vmem>>, vector<128x64xf32>
    %cst_13 = arith.constant dense<0.000000e+00> : vector<128x64xf32>
    %14 = tpu.matmul %12, %13, %cst_13 {dimension_numbers = #tpu.dot_dimension_numbers<[1], [0], [0], [1], [0, 0, 1, 1], [], []>} : vector<128x128xf32>, vector<128x64xf32>, vector<128x64xf32> -> vector<128x64xf32>
    %15 = vector.broadcast %1 : vector<1x64xf32> to vector<128x64xf32>
    %16 = arith.addf %14, %15 : vector<128x64xf32>
    %cst_14 = arith.constant 0.000000e+00 : f32
    %17 = vector.broadcast %cst_14 : f32 to vector<128x64xf32>
    %18 = arith.maximumf %16, %17 : vector<128x64xf32>
    %c0_15 = arith.constant 0 : index
    %c0_16 = arith.constant 0 : index
    %19 = vector.load %arg4[%c0_15, %c0_16] : memref<64x64xf32, #tpu.memory_space<vmem>>, vector<64x64xf32>
    %cst_17 = arith.constant dense<0.000000e+00> : vector<128x64xf32>
    %20 = tpu.matmul %18, %19, %cst_17 {dimension_numbers = #tpu.dot_dimension_numbers<[1], [0], [0], [1], [0, 0, 1, 1], [], []>} : vector<128x64xf32>, vector<64x64xf32>, vector<128x64xf32> -> vector<128x64xf32>
    %21 = vector.broadcast %2 : vector<1x64xf32> to vector<128x64xf32>
    %22 = arith.addf %20, %21 : vector<128x64xf32>
    %c0_18 = arith.constant 0 : index
    %c0_19 = arith.constant 0 : index
    %23 = vector.load %arg5[%c0_18, %c0_19] : memref<64x64xf32, #tpu.memory_space<vmem>>, vector<64x64xf32>
    %cst_20 = arith.constant dense<0.000000e+00> : vector<128x64xf32>
    %24 = tpu.matmul %22, %23, %cst_20 {dimension_numbers = #tpu.dot_dimension_numbers<[1], [0], [0], [1], [0, 0, 1, 1], [], []>} : vector<128x64xf32>, vector<64x64xf32>, vector<128x64xf32> -> vector<128x64xf32>
    %25 = vector.broadcast %3 : vector<1x64xf32> to vector<128x64xf32>
    %26 = arith.addf %24, %25 : vector<128x64xf32>
    %cst_21 = arith.constant 0.000000e+00 : f32
    %27 = vector.broadcast %cst_21 : f32 to vector<128x64xf32>
    %28 = arith.maximumf %26, %27 : vector<128x64xf32>
    %29 = arith.addf %22, %28 : vector<128x64xf32>
    %30 = vector.broadcast %4 : vector<1x64xf32> to vector<128x64xf32>
    %31 = arith.mulf %22, %30 : vector<128x64xf32>
    %32 = vector.broadcast %5 : vector<1x64xf32> to vector<128x64xf32>
    %33 = arith.addf %31, %32 : vector<128x64xf32>
    %cst_22 = arith.constant 0.000000e+00 : f32
    %34 = vector.broadcast %cst_22 : f32 to vector<128x64xf32>
    %35 = arith.maximumf %33, %34 : vector<128x64xf32>
    %36 = vector.broadcast %4 : vector<1x64xf32> to vector<128x64xf32>
    %37 = arith.mulf %29, %36 : vector<128x64xf32>
    %38 = vector.broadcast %5 : vector<1x64xf32> to vector<128x64xf32>
    %39 = arith.addf %37, %38 : vector<128x64xf32>
    %cst_23 = arith.constant 0.000000e+00 : f32
    %40 = vector.broadcast %cst_23 : f32 to vector<128x64xf32>
    %41 = arith.maximumf %39, %40 : vector<128x64xf32>
    %42 = arith.addf %35, %41 : vector<128x64xf32>
    %c0_24 = arith.constant 0 : index
    %c0_25 = arith.constant 0 : index
    %43 = vector.load %arg6[%c0_24, %c0_25] : memref<8x64xf32, #tpu.memory_space<vmem>>, vector<8x64xf32>
    %cst_26 = arith.constant dense<0.000000e+00> : vector<8x128xf32>
    %44 = tpu.matmul %43, %42, %cst_26 {dimension_numbers = #tpu.dot_dimension_numbers<[1], [1], [0], [0], [0, 0, 1, 0], [], []>} : vector<8x64xf32>, vector<128x64xf32>, vector<8x128xf32> -> vector<8x128xf32>
    %45 = vector.extract_strided_slice %44 {offsets = [0, 0], sizes = [2, 128], strides = [1, 1]} : vector<8x128xf32> to vector<2x128xf32>
    %c0_27 = arith.constant 0 : index
    %c0_28 = arith.constant 0 : index
    %46 = vector.load %arg8[%c0_27, %c0_28] : memref<2x128xf32, #tpu.memory_space<vmem>>, vector<2x128xf32>
    tpu.vector_store %arg8[%c0_27, %c0_28], %45 {strides = array<i32>} : memref<2x128xf32, #tpu.memory_space<vmem>>, vector<2x128xf32>,
    return
  }
  func.func @transform_0(%arg0: i32) -> (i32, i32) {
    %c0_i32 = arith.constant 0 : i32
    %c0_i32_0 = arith.constant 0 : i32
    return %arg0, %c0_i32 : i32, i32
  }
  func.func @transform_1(%arg0: i32) -> (i32, i32) {
    %c0_i32 = arith.constant 0 : i32
    %c0_i32_0 = arith.constant 0 : i32
    %c0_i32_1 = arith.constant 0 : i32
    return %c0_i32, %c0_i32_0 : i32, i32
  }
  func.func @transform_2(%arg0: i32) -> (i32, i32) {
    %c0_i32 = arith.constant 0 : i32
    %c0_i32_0 = arith.constant 0 : i32
    %c0_i32_1 = arith.constant 0 : i32
    return %c0_i32, %c0_i32_0 : i32, i32
  }
  func.func @transform_3(%arg0: i32) -> (i32, i32) {
    %c0_i32 = arith.constant 0 : i32
    %c0_i32_0 = arith.constant 0 : i32
    %c0_i32_1 = arith.constant 0 : i32
    return %c0_i32, %c0_i32_0 : i32, i32
  }
  func.func @transform_4(%arg0: i32) -> (i32, i32) {
    %c0_i32 = arith.constant 0 : i32
    %c0_i32_0 = arith.constant 0 : i32
    %c0_i32_1 = arith.constant 0 : i32
    return %c0_i32, %c0_i32_0 : i32, i32
  }
  func.func @transform_5(%arg0: i32) -> (i32, i32) {
    %c0_i32 = arith.constant 0 : i32
    %c0_i32_0 = arith.constant 0 : i32
    %c0_i32_1 = arith.constant 0 : i32
    return %c0_i32, %c0_i32_0 : i32, i32
  }
  func.func @transform_6(%arg0: i32) -> (i32, i32) {
    %c0_i32 = arith.constant 0 : i32
    %c0_i32_0 = arith.constant 0 : i32
    %c0_i32_1 = arith.constant 0 : i32
    return %c0_i32, %c0_i32_0 : i32, i32
  }
  func.func @transform_7(%arg0: i32) -> (i32, i32) {
    %c0_i32 = arith.constant 0 : i32
    %c0_i32_0 = arith.constant 0 : i32
    return %c0_i32, %arg0 : i32, i32
  }
}

</mosaic_0001>

<llo_original>
// kernel: gesanet_forward.1
$region0: #{gesanet_forward.1}
  #allocation0 [shape = 'u32[]', space=smem, size = 0x4, offset = 0x4, fixed_abs, tag = 'smem constant byte address 0x4 - core index']
  #allocation1 [shape = 'u32[144,128]{1,0:T(1,128)}', space=vmem, size = 0x12000, scoped, tag = 'internal scratch']
  %s0 = inlined_call_operand.vmem [shape: bf16[512,96], index: 0, kind: input, shape index: {}]
  %s1 = inlined_call_operand.vmem [shape: bf16[96,128], index: 1, kind: input, shape index: {}]
  %s2 = inlined_call_operand.vmem [shape: f32[128,64], index: 2, kind: input, shape index: {}]
  %s3 = inlined_call_operand.vmem [shape: f32[64,64], index: 3, kind: input, shape index: {}]
  %s4 = inlined_call_operand.vmem [shape: f32[64,64], index: 4, kind: input, shape index: {}]
  %s5 = inlined_call_operand.vmem [shape: f32[8,64], index: 5, kind: input, shape index: {}]
  %s6 = inlined_call_operand.vmem [shape: f32[8,128], index: 6, kind: input, shape index: {}]
  %s7 = inlined_call_operand.vmem [shape: f32[2,512], index: 7, kind: output, shape index: {}]
  %s8 = sld [smem:[#allocation0]]
  $region61: #{gesanet_forward.1} parent=0
    _
  %s10 = ssub.s32 1, %s8
  %s11 = scalar_select 0, %s10, %s8
  loop: start=0, step=1, limit=6
  $region2: #{gesanet_forward.1} parent=0 // loop_pre_header
    _
  $region3: #{gesanet_forward.1} parent=0 // loop_header
    %s13 = sphi 0, %s17
    %p14 = scmp.ge.s32.totalorder %s13, 6
    %s23 = sphi 0, %s25
    %s26 = sphi 0, %s23
    %s27 = sphi 0, %s26
    %s43 = sphi 0, %s27
    %s47 = sphi 0, %s47
    %s49 = sphi 0, %s47
    %s50 = sphi 0, %s49
    %s64 = sphi 0, %s50
    %s68 = sphi 0, %s68
    %s70 = sphi 0, %s68
    %s71 = sphi 0, %s70
    %s85 = sphi 0, %s71
    %s89 = sphi 0, %s89
    %s91 = sphi 0, %s89
    %s92 = sphi 0, %s91
    %s106 = sphi 0, %s92
    %s110 = sphi 0, %s110
    %s112 = sphi 0, %s110
    %s113 = sphi 0, %s112
    %s127 = sphi 0, %s113
    %s131 = sphi 0, %s131
    %s133 = sphi 0, %s131
    %s134 = sphi 0, %s133
    %s148 = sphi 0, %s134
    %s152 = sphi 0, %s152
    %s154 = sphi 0, %s152
    %s155 = sphi 0, %s154
    %s169 = sphi 0, %s155
    %s175 = sphi 0, %s177
    %s178 = sphi 0, %s175
    %s179 = sphi 0, %s178
    %s195 = sphi 0, %s179
  $region4: #{gesanet_forward.1} parent=0 // loop_header_branch
    %16 = sbr.rel (%p14) target = $region8
  $region5: #{gesanet_forward.1} parent=0 // loop_body
    %s18 = ssub.s32 %s13, 1
    %s19 = ssub.s32 %s13, 2
    %s20 = sadd.s32 %s13, 1
    %s21 = ssub.s32 %s13, %s20
    %p22 = scmp.eq.s32.totalorder %s21, 0
    %s24 = sadd.s32 %s23, 1
    %s25 = scalar_select %p22, %s23, %s24
    %p28 = pneg %p22
    %p29 = scmp.eq.s32.totalorder %s13, 3
    %p30 = por %p28, %p29
    %p31 = scmp.ne.s32.totalorder %s23, %s26
    %p32 = scmp.eq.s32.totalorder %s13, 0
    %p33 = por %p31, %p32
    %p34 = scmp.ne.s32.totalorder %s23, %s26
    %p35 = scmp.eq.s32.totalorder %s18, 3
    %p36 = por %p34, %p35
    %p37 = scmp.ne.s32.totalorder %s26, %s27
    %p38 = scmp.eq.s32.totalorder %s18, 0
    %p39 = por %p37, %p38
    %p40 = scmp.ne.s32.totalorder %s26, %s27
    %p41 = scmp.eq.s32.totalorder %s19, 3
    %p42 = por %p40, %p41
    %p44 = scmp.ne.s32.totalorder %s27, %s43
    %p45 = scmp.eq.s32.totalorder %s19, 0
    %p46 = por %p44, %p45
    %s48 = sadd.s32 %s47, 1
    %p51 = scmp.eq.s32.totalorder %s13, 3
    %p52 = scmp.ne.s32.totalorder %s47, %s49
    %p53 = scmp.eq.s32.totalorder %s13, 0
    %p54 = por %p52, %p53
    %p55 = scmp.ne.s32.totalorder %s47, %s49
    %p56 = scmp.eq.s32.totalorder %s18, 3
    %p57 = por %p55, %p56
    %p58 = scmp.ne.s32.totalorder %s49, %s50
    %p59 = scmp.eq.s32.totalorder %s18, 0
    %p60 = por %p58, %p59
    %p61 = scmp.ne.s32.totalorder %s49, %s50
    %p62 = scmp.eq.s32.totalorder %s19, 3
    %p63 = por %p61, %p62
    %p65 = scmp.ne.s32.totalorder %s50, %s64
    %p66 = scmp.eq.s32.totalorder %s19, 0
    %p67 = por %p65, %p66
    %s69 = sadd.s32 %s68, 1
    %p72 = scmp.eq.s32.totalorder %s13, 3
    %p73 = scmp.ne.s32.totalorder %s68, %s70
    %p74 = scmp.eq.s32.totalorder %s13, 0
    %p75 = por %p73, %p74
    %p76 = scmp.ne.s32.totalorder %s68, %s70
    %p77 = scmp.eq.s32.totalorder %s18, 3
    %p78 = por %p76, %p77
    %p79 = scmp.ne.s32.totalorder %s70, %s71
    %p80 = scmp.eq.s32.totalorder %s18, 0
    %p81 = por %p79, %p80
    %p82 = scmp.ne.s32.totalorder %s70, %s71
    %p83 = scmp.eq.s32.totalorder %s19, 3
    %p84 = por %p82, %p83
    %p86 = scmp.ne.s32.totalorder %s71, %s85
    %p87 = scmp.eq.s32.totalorder %s19, 0
    %p88 = por %p86, %p87
    %s90 = sadd.s32 %s89, 1
    %p93 = scmp.eq.s32.totalorder %s13, 3
    %p94 = scmp.ne.s32.totalorder %s89, %s91
    %p95 = scmp.eq.s32.totalorder %s13, 0
    %p96 = por %p94, %p95
    %p97 = scmp.ne.s32.totalorder %s89, %s91
    %p98 = scmp.eq.s32.totalorder %s18, 3
    %p99 = por %p97, %p98
    %p100 = scmp.ne.s32.totalorder %s91, %s92
    %p101 = scmp.eq.s32.totalorder %s18, 0
    %p102 = por %p100, %p101
    %p103 = scmp.ne.s32.totalorder %s91, %s92
    %p104 = scmp.eq.s32.totalorder %s19, 3
    %p105 = por %p103, %p104
    %p107 = scmp.ne.s32.totalorder %s92, %s106
    %p108 = scmp.eq.s32.totalorder %s19, 0
    %p109 = por %p107, %p108
    %s111 = sadd.s32 %s110, 1
    %p114 = scmp.eq.s32.totalorder %s13, 3
    %p115 = scmp.ne.s32.totalorder %s110, %s112
    %p116 = scmp.eq.s32.totalorder %s13, 0
    %p117 = por %p115, %p116
    %p118 = scmp.ne.s32.totalorder %s110, %s112
    %p119 = scmp.eq.s32.totalorder %s18, 3
    %p120 = por %p118, %p119
    %p121 = scmp.ne.s32.totalorder %s112, %s113
    %p122 = scmp.eq.s32.totalorder %s18, 0
    %p123 = por %p121, %p122
    %p124 = scmp.ne.s32.totalorder %s112, %s113
    %p125 = scmp.eq.s32.totalorder %s19, 3
    %p126 = por %p124, %p125
    %p128 = scmp.ne.s32.totalorder %s113, %s127
    %p129 = scmp.eq.s32.totalorder %s19, 0
    %p130 = por %p128, %p129
    %s132 = sadd.s32 %s131, 1
    %p135 = scmp.eq.s32.totalorder %s13, 3
    %p136 = scmp.ne.s32.totalorder %s131, %s133
    %p137 = scmp.eq.s32.totalorder %s13, 0
    %p138 = por %p136, %p137
    %p139 = scmp.ne.s32.totalorder %s131, %s133
    %p140 = scmp.eq.s32.totalorder %s18, 3
    %p141 = por %p139, %p140
    %p142 = scmp.ne.s32.totalorder %s133, %s134
    %p143 = scmp.eq.s32.totalorder %s18, 0
    %p144 = por %p142, %p143
    %p145 = scmp.ne.s32.totalorder %s133, %s134
    %p146 = scmp.eq.s32.totalorder %s19, 3
    %p147 = por %p145, %p146
    %p149 = scmp.ne.s32.totalorder %s134, %s148
    %p150 = scmp.eq.s32.totalorder %s19, 0
    %p151 = por %p149, %p150
    %s153 = sadd.s32 %s152, 1
    %p156 = scmp.eq.s32.totalorder %s13, 3
    %p157 = scmp.ne.s32.totalorder %s152, %s154
    %p158 = scmp.eq.s32.totalorder %s13, 0
    %p159 = por %p157, %p158
    %p160 = scmp.ne.s32.totalorder %s152, %s154
    %p161 = scmp.eq.s32.totalorder %s18, 3
    %p162 = por %p160, %p161
    %p163 = scmp.ne.s32.totalorder %s154, %s155
    %p164 = scmp.eq.s32.totalorder %s18, 0
    %p165 = por %p163, %p164
    %p166 = scmp.ne.s32.totalorder %s154, %s155
    %p167 = scmp.eq.s32.totalorder %s19, 3
    %p168 = por %p166, %p167
    %p170 = scmp.ne.s32.totalorder %s155, %s169
    %p171 = scmp.eq.s32.totalorder %s19, 0
    %p172 = por %p170, %p171
    %s173 = ssub.s32 %s13, %s20
    %p174 = scmp.eq.s32.totalorder %s173, 0
    %s176 = sadd.s32 %s175, 1
    %s177 = scalar_select %p174, %s175, %s176
    %p180 = pneg %p174
    %p181 = scmp.eq.s32.totalorder %s13, 3
    %p182 = por %p180, %p181
    %p183 = scmp.ne.s32.totalorder %s175, %s178
    %p184 = scmp.eq.s32.totalorder %s13, 0
    %p185 = por %p183, %p184
    %p186 = scmp.ne.s32.totalorder %s175, %s178
    %p187 = scmp.eq.s32.totalorder %s18, 3
    %p188 = por %p186, %p187
    %p189 = scmp.ne.s32.totalorder %s178, %s179
    %p190 = scmp.eq.s32.totalorder %s18, 0
    %p191 = por %p189, %p190
    %p192 = scmp.ne.s32.totalorder %s178, %s179
    %p193 = scmp.eq.s32.totalorder %s19, 3
    %p194 = por %p192, %p193
    %p196 = scmp.ne.s32.totalorder %s179, %s195
    %p197 = scmp.eq.s32.totalorder %s19, 0
    %p198 = por %p196, %p197
    %p199 = scmp.le.s32.totalorder 1, %s13
    %p200 = scmp.lt.s32.totalorder %s13, 5
    %p201 = pnand %p199, %p200
    %p202 = pneg %p201
    // Predicated region
    $region9: #{gesanet_forward.1} parent=5 // pred_check
      _
    $region10: #{gesanet_forward.1} parent=5 // pred_check_branch
      %204 = sbr.rel (%p201) target = $region12
    $region11: #{gesanet_forward.1} parent=5 // pred_region
      %s205 = ssub.s32 %s13, 1
      // Predicated region
      $region13: #{gesanet_forward.1} parent=11 // pred_check
        %p206 = pneg %p60
      $region14: #{gesanet_forward.1} parent=11 // pred_check_branch
        %208 = sbr.rel (%p206) target = $region16
      $region15: #{gesanet_forward.1} parent=11 // pred_region
        _
      $region16: #{gesanet_forward.1} parent=11 // pred_fallthru
        _
      // Predicated region
      $region17: #{gesanet_forward.1} parent=11 // pred_check
        %p209 = pneg %p81
      $region18: #{gesanet_forward.1} parent=11 // pred_check_branch
        %211 = sbr.rel (%p209) target = $region20
      $region19: #{gesanet_forward.1} parent=11 // pred_region
        _
      $region20: #{gesanet_forward.1} parent=11 // pred_fallthru
        _
      // Predicated region
      $region21: #{gesanet_forward.1} parent=11 // pred_check
        %p212 = pneg %p102
      $region22: #{gesanet_forward.1} parent=11 // pred_check_branch
        %214 = sbr.rel (%p212) target = $region24
      $region23: #{gesanet_forward.1} parent=11 // pred_region
        _
      $region24: #{gesanet_forward.1} parent=11 // pred_fallthru
        _
      // Predicated region
      $region25: #{gesanet_forward.1} parent=11 // pred_check
        %p215 = pneg %p123
      $region26: #{gesanet_forward.1} parent=11 // pred_check_branch
        %217 = sbr.rel (%p215) target = $region28
      $region27: #{gesanet_forward.1} parent=11 // pred_region
        _
      $region28: #{gesanet_forward.1} parent=11 // pred_fallthru
        _
      // Predicated region
      $region29: #{gesanet_forward.1} parent=11 // pred_check
        %p218 = pneg %p144
      $region30: #{gesanet_forward.1} parent=11 // pred_check_branch
        %220 = sbr.rel (%p218) target = $region32
      $region31: #{gesanet_forward.1} parent=11 // pred_region
        _
      $region32: #{gesanet_forward.1} parent=11 // pred_fallthru
        _
      // Predicated region
      $region33: #{gesanet_forward.1} parent=11 // pred_check
        %p221 = pneg %p165
      $region34: #{gesanet_forward.1} parent=11 // pred_check_branch
        %223 = sbr.rel (%p221) target = $region36
      $region35: #{gesanet_forward.1} parent=11 // pred_region
        _
      $region36: #{gesanet_forward.1} parent=11 // pred_fallthru
        _
    $region12: #{gesanet_forward.1} parent=5 // pred_fallthru
      _
    %p224 = scmp.lt.s32.totalorder %s13, 4
    // Predicated region
    $region37: #{gesanet_forward.1} parent=5 // pred_check
      %p225 = pneg %p224
    $region38: #{gesanet_forward.1} parent=5 // pred_check_branch
      %227 = sbr.rel (%p225) target = $region40
    $region39: #{gesanet_forward.1} parent=5 // pred_region
      // Predicated region
      $region41: #{gesanet_forward.1} parent=39 // pred_check
        %p228 = pneg %p33
      $region42: #{gesanet_forward.1} parent=39 // pred_check_branch
        %230 = sbr.rel (%p228) target = $region44
      $region43: #{gesanet_forward.1} parent=39 // pred_region
        %s231 = smul.u32 16, %s13
        %p232 = scmp.lt.s32.totalorder %s231, 63
        %s233 = scalar_select %p232, %s231, 63
        %s234 = smul.addr %s233, 4
        %s235 = scalar_lea.vmem %s0, %s234
        %s236 = smul.u32 16, %s13
      $region44: #{gesanet_forward.1} parent=39 // pred_fallthru
        _
    $region40: #{gesanet_forward.1} parent=5 // pred_fallthru
      _
    %p237 = scmp.le.s32.totalorder 1, %s13
    %p238 = scmp.lt.s32.totalorder %s13, 5
    %p239 = pnand %p237, %p238
    %p240 = pneg %p239
    // Predicated region
    $region45: #{gesanet_forward.1} parent=5 // pred_check
      _
    $region46: #{gesanet_forward.1} parent=5 // pred_check_branch
      %242 = sbr.rel (%p239) target = $region48
    $region47: #{gesanet_forward.1} parent=5 // pred_region
      %s243 = ssub.s32 %s13, 1
      %s244 = smul.u32 16, %s18
      %p245 = scmp.lt.s32.totalorder %s244, 63
      %s246 = scalar_select %p245, %s244, 63
      %s247 = smul.addr %s246, 4
      %s248 = scalar_lea.vmem %s0, %s247
      %p249 = pneg %p39
      %p250 = pneg %p36
      %p251 = pneg %p60
      %p252 = pneg %p57
      %p253 = pneg %p81
      %p254 = pneg %p78
      %p255 = pneg %p102
      %p256 = pneg %p99
      %p257 = pneg %p123
      %p258 = pneg %p120
      %p259 = pneg %p144
      %p260 = pneg %p141
      %p261 = pneg %p165
      %p262 = pneg %p162
      %p263 = pneg %p191
      %p264 = pneg %p188
      %p265 = scmp.lt.s32.totalorder %s18, 3
      %s266 = scalar_select %p265, %s18, 3
      %s267 = smul.addr %s266, 2
      %s268 = scalar_lea.vmem %s7, %s267
      %s269 = smul.u32 16, %s18
      %p270 = scmp.lt.s32.totalorder %s269, 63
      %s271 = scalar_select %p270, %s269, 63
      %s272 = smul.addr %s271, 4
      %s273 = scalar_lea.vmem %s0, %s272
      %s274 = smul.u32 16, %s18
      %p275 = scmp.lt.s32.totalorder %s18, 3
      %s276 = scalar_select %p275, %s18, 3
      %s277 = smul.addr %s276, 2
      %s278 = scalar_lea.vmem %s7, %s277
      %v280 = vld [vmem:[%s6] sm:$0x1]
      %v281 = vld [vmem:[%s6 + $0x1] sm:$0x1]
      %v282 = vld [vmem:[%s6 + $0x2] sm:$0x1]
      %v283 = vld [vmem:[%s6 + $0x3] sm:$0x1]
      %v284 = vld [vmem:[%s6 + $0x4] sm:$0x1]
      %v285 = vld [vmem:[%s6 + $0x5] sm:$0x1]
      %v286 = vld [vmem:[%s273] sm:$0xf]
      %v287 = vld [vmem:[%s273 + $0x4] sm:$0xf]
      %v288 = vld [vmem:[%s273 + $0x8] sm:$0xf]
      %v289 = vld [vmem:[%s273 + $0xc] sm:$0xf]
      %v290 = vld [vmem:[%s273 + $0x10] sm:$0xf]
      %v291 = vld [vmem:[%s273 + $0x14] sm:$0xf]
      %v292 = vld [vmem:[%s273 + $0x18] sm:$0xf]
      %v293 = vld [vmem:[%s273 + $0x1c] sm:$0xf]
      %v294 = vld [vmem:[%s273 + $0x20] sm:$0xf]
      %v295 = vld [vmem:[%s273 + $0x24] sm:$0xf]
      %v296 = vld [vmem:[%s273 + $0x28] sm:$0xf]
      %v297 = vld [vmem:[%s273 + $0x2c] sm:$0xf]
      %v298 = vld [vmem:[%s273 + $0x30] sm:$0xf]
      %v299 = vld [vmem:[%s273 + $0x34] sm:$0xf]
      %v300 = vld [vmem:[%s273 + $0x38] sm:$0xf]
      %v301 = vld [vmem:[%s273 + $0x3c] sm:$0xf]
      %v302 = vld [vmem:[%s1] sm:$0xf]
      %v303 = vld [vmem:[%s1 + $0x4] sm:$0xf]
      %v304 = vld [vmem:[%s1 + $0x8] sm:$0xf]
      %v305 = vld [vmem:[%s1 + $0xc] sm:$0xf]
      %v306 = vld [vmem:[%s1 + $0x10] sm:$0xf]
      %v307 = vld [vmem:[%s1 + $0x14] sm:$0xf]
      %v308 = vld [vmem:[%s1 + $0x18] sm:$0xf]
      %v309 = vld [vmem:[%s1 + $0x1c] sm:$0xf]
      %v310 = vld [vmem:[%s1 + $0x20] sm:$0xf]
      %v311 = vld [vmem:[%s1 + $0x24] sm:$0xf]
      %v312 = vld [vmem:[%s1 + $0x28] sm:$0xf]
      %v313 = vld [vmem:[%s1 + $0x2c] sm:$0xf]
      %v314 = vlaneseq
      %v315 = vshrl.u32 %v314, 7
      %v316 = vsub.s32 0, %v315
      %v317 = vrot.slane %v280, %v316
      %v334 = vunpack.c.l.b16 %v286
      %v335 = vunpack.c.l.b16 %v287
      %v336 = vunpack.c.l.b16 %v288
      %v337 = vunpack.c.l.b16 %v289
      %v338 = vunpack.c.l.b16 %v290
      %v339 = vunpack.c.l.b16 %v291
      %v340 = vunpack.c.l.b16 %v292
      %v341 = vunpack.c.l.b16 %v293
      %v342 = vunpack.c.l.b16 %v294
      %v343 = vunpack.c.l.b16 %v295
      %v344 = vunpack.c.l.b16 %v296
      %v345 = vunpack.c.l.b16 %v297
      %v346 = vunpack.c.l.b16 %v298
      %v347 = vunpack.c.l.b16 %v299
      %v348 = vunpack.c.l.b16 %v300
      %v349 = vunpack.c.l.b16 %v301
      %v350 = vpack.c.b16 %v335, %v334
      %v351 = vpack.c.b16 %v337, %v336
      %v352 = vpack.c.b16 %v339, %v338
      %v353 = vpack.c.b16 %v341, %v340
      %v354 = vpack.c.b16 %v343, %v342
      %v355 = vpack.c.b16 %v345, %v344
      %v356 = vpack.c.b16 %v347, %v346
      %v357 = vpack.c.b16 %v349, %v348
      %v370 = vunpack.c.l.b16 %v302
      %v371 = vunpack.c.l.b16 %v303
      %v372 = vunpack.c.l.b16 %v304
      %v373 = vunpack.c.l.b16 %v305
      %v374 = vunpack.c.l.b16 %v306
      %v375 = vunpack.c.l.b16 %v307
      %v376 = vunpack.c.l.b16 %v308
      %v377 = vunpack.c.l.b16 %v309
      %v378 = vunpack.c.l.b16 %v310
      %v379 = vunpack.c.l.b16 %v311
      %v380 = vunpack.c.l.b16 %v312
      %v381 = vunpack.c.l.b16 %v313
      %v382 = vpack.c.b16 %v371, %v370
      %v383 = vpack.c.b16 %v373, %v372
      %v384 = vpack.c.b16 %v375, %v374
      %v385 = vpack.c.b16 %v377, %v376
      %v386 = vpack.c.b16 %v379, %v378
      %v387 = vpack.c.b16 %v381, %v380
      %vm394 = vcmask 785408
      %v396 = vsel %vm394, %v350, 0
      %v399 = vsel %vm394, %v351, 0
      %v402 = vsel %vm394, %v352, 0
      %v405 = vsel %vm394, %v353, 0
      %v408 = vsel %vm394, %v354, 0
      %v411 = vsel %vm394, %v355, 0
      %v414 = vsel %vm394, %v356, 0
      %v417 = vsel %vm394, %v357, 0
      %419 = vmatprep.subr.bf16.mxu0 0
      %420 = vmatpush1.bf16.msra.mxu0 0
      %421 = vmatprep.subr.bf16.mxu0 0
      %422 = vmatpush1.bf16.msra.mxu0 0
      %423 = vmatprep.subr.bf16.mxu0 0
      %424 = vmatpush1.bf16.msra.mxu0 %v387
      %425 = vmatprep.subr.bf16.mxu0 0
      %426 = vmatpush1.bf16.msra.mxu0 %v386
      %427 = vmatprep.subr.bf16.mxu0 0
      %428 = vmatpush1.bf16.msra.mxu0 %v385
      %429 = vmatprep.subr.bf16.mxu0 0
      %430 = vmatpush1.bf16.msra.mxu0 %v384
      %431 = vmatprep.subr.bf16.mxu0 0
      %432 = vmatpush1.bf16.msra.mxu0 %v383
      %433 = vmatprep.subr.bf16.mxu0 0
      %434 = vmatpush1.bf16.msra.mxu0 %v382
      %435 = vmatprep.subr.bf16.mxu0 0
      %436 = vmatpush2.bf16.msra.mxu0 0
      %437 = vmatprep.subr.bf16.mxu0 0
      %438 = vmatpush2.bf16.msra.mxu0 0
      %439 = vmatprep.subr.bf16.mxu0 0
      %440 = vmatpush2.bf16.msra.mxu0 0
      %441 = vmatprep.subr.bf16.mxu0 0
      %442 = vmatpush2.bf16.msra.mxu0 0
      %443 = vmatprep.subr.bf16.mxu0 0
      %444 = vmatpush2.bf16.msra.mxu0 0
      %445 = vmatprep.subr.bf16.mxu0 0
      %446 = vmatpush2.bf16.msra.mxu0 0
      %447 = vmatprep.subr.bf16.mxu0 0
      %448 = vmatpush2.bf16.msra.mxu0 0
      %449 = vmatprep.subr.bf16.mxu0 0
      %450 = vmatpush2.bf16.msra.mxu0 0
      %451 = vmatprep.mubr.bf16.mxu0 0
      %452 = vmatmul.mubr.bf16.gmra.mxu0 %v396
      %v453 = vpop.f32.mrf.mxu0
      %v454 = vadd.f32 %v317, %v453
      %v455 = vpop.f32.mrf.mxu0
      %v456 = vpop.f32.mrf.mxu0
      %v457 = vadd.f32 %v317, %v456
      %v458 = vpop.f32.mrf.mxu0
      %459 = vmatprep.mubr.bf16.mxu0 0
      %460 = vmatmul.mubr.bf16.gmra.mxu0 %v399
      %v461 = vpop.f32.mrf.mxu0
      %v462 = vadd.f32 %v317, %v461
      %v463 = vpop.f32.mrf.mxu0
      %v464 = vpop.f32.mrf.mxu0
      %v465 = vadd.f32 %v317, %v464
      %v466 = vpop.f32.mrf.mxu0
      %467 = vmatprep.mubr.bf16.mxu0 0
      %468 = vmatmul.mubr.bf16.gmra.mxu0 %v402
      %v469 = vpop.f32.mrf.mxu0
      %v470 = vadd.f32 %v317, %v469
      %v471 = vpop.f32.mrf.mxu0
      %v472 = vpop.f32.mrf.mxu0
      %v473 = vadd.f32 %v317, %v472
      %v474 = vpop.f32.mrf.mxu0
      %475 = vmatprep.mubr.bf16.mxu0 0
      %476 = vmatmul.mubr.bf16.gmra.mxu0 %v405
      %v477 = vpop.f32.mrf.mxu0
      %v478 = vadd.f32 %v317, %v477
      %v479 = vpop.f32.mrf.mxu0
      %v480 = vpop.f32.mrf.mxu0
      %v481 = vadd.f32 %v317, %v480
      %v482 = vpop.f32.mrf.mxu0
      %483 = vmatprep.mubr.bf16.mxu0 0
      %484 = vmatmul.mubr.bf16.gmra.mxu0 %v408
      %v485 = vpop.f32.mrf.mxu0
      %v486 = vadd.f32 %v317, %v485
      %v487 = vpop.f32.mrf.mxu0
      %v488 = vpop.f32.mrf.mxu0
      %v489 = vadd.f32 %v317, %v488
      %v490 = vpop.f32.mrf.mxu0
      %491 = vmatprep.mubr.bf16.mxu0 0
      %492 = vmatmul.mubr.bf16.gmra.mxu0 %v411
      %v493 = vpop.f32.mrf.mxu0
      %v494 = vadd.f32 %v317, %v493
      %v495 = vpop.f32.mrf.mxu0
      %v496 = vpop.f32.mrf.mxu0
      %v497 = vadd.f32 %v317, %v496
      %v498 = vpop.f32.mrf.mxu0
      %499 = vmatprep.mubr.bf16.mxu0 0
      %500 = vmatmul.mubr.bf16.gmra.mxu0 %v414
      %v501 = vpop.f32.mrf.mxu0
      %v502 = vadd.f32 %v317, %v501
      %v503 = vpop.f32.mrf.mxu0
      %v504 = vpop.f32.mrf.mxu0
      %v505 = vadd.f32 %v317, %v504
      %v506 = vpop.f32.mrf.mxu0
      %507 = vmatprep.mubr.bf16.mxu0 0
      %508 = vmatmul.mubr.bf16.gmra.mxu0 %v417
      %v509 = vpop.f32.mrf.mxu0
      %v510 = vadd.f32 %v317, %v509
      %v511 = vpop.f32.mrf.mxu0
      %v512 = vpop.f32.mrf.mxu0
      %v513 = vadd.f32 %v317, %v512
      %v514 = vpop.f32.mrf.mxu0
      %515 = vdwg.mxu0
      %v516 = vmax.f32 %v454, 0.0
      %v517 = vmax.f32 %v457, 0.0
      %v518 = vmax.f32 %v462, 0.0
      %v519 = vmax.f32 %v465, 0.0
      %v520 = vmax.f32 %v470, 0.0
      %v521 = vmax.f32 %v473, 0.0
      %v522 = vmax.f32 %v478, 0.0
      %v523 = vmax.f32 %v481, 0.0
      %v524 = vmax.f32 %v486, 0.0
      %v525 = vmax.f32 %v489, 0.0
      %v526 = vmax.f32 %v494, 0.0
      %v527 = vmax.f32 %v497, 0.0
      %v528 = vmax.f32 %v502, 0.0
      %v529 = vmax.f32 %v505, 0.0
      %v530 = vmax.f32 %v510, 0.0
      %v531 = vmax.f32 %v513, 0.0
      %v532 = vld [vmem:[%s2] sm:$0xff]
      %v533 = vld [vmem:[%s2 + $0x8] sm:$0xff]
      %v534 = vld [vmem:[%s2 + $0x10] sm:$0xff]
      %v535 = vld [vmem:[%s2 + $0x18] sm:$0xff]
      %v536 = vld [vmem:[%s2 + $0x20] sm:$0xff]
      %v537 = vld [vmem:[%s2 + $0x28] sm:$0xff]
      %v538 = vld [vmem:[%s2 + $0x30] sm:$0xff]
      %v539 = vld [vmem:[%s2 + $0x38] sm:$0xff]
      %v540 = vld [vmem:[%s2 + $0x40] sm:$0xff]
      %v541 = vld [vmem:[%s2 + $0x48] sm:$0xff]
      %v542 = vld [vmem:[%s2 + $0x50] sm:$0xff]
      %v543 = vld [vmem:[%s2 + $0x58] sm:$0xff]
      %v544 = vld [vmem:[%s2 + $0x60] sm:$0xff]
      %v545 = vld [vmem:[%s2 + $0x68] sm:$0xff]
      %v546 = vld [vmem:[%s2 + $0x70] sm:$0xff]
      %v547 = vld [vmem:[%s2 + $0x78] sm:$0xff]
      %v548 = vlaneseq
      %v549 = vshrl.u32 %v548, 7
      %v550 = vsub.s32 0, %v549
      %v551 = vrot.slane %v281, %v550
      %552 = vmatprep.subr.mxu0 0.0
      %553 = vmatpush1.msra.mxu0 %v547
      %554 = vmatprep.subr.mxu0 0.0
      %555 = vmatpush1.msra.mxu0 %v546
      %556 = vmatprep.subr.mxu0 0.0
      %557 = vmatpush1.msra.mxu0 %v545
      %558 = vmatprep.subr.mxu0 0.0
      %559 = vmatpush1.msra.mxu0 %v544
      %560 = vmatprep.subr.mxu0 0.0
      %561 = vmatpush1.msra.mxu0 %v543
      %562 = vmatprep.subr.mxu0 0.0
      %563 = vmatpush1.msra.mxu0 %v542
      %564 = vmatprep.subr.mxu0 0.0
      %565 = vmatpush1.msra.mxu0 %v541
      %566 = vmatprep.subr.mxu0 0.0
      %567 = vmatpush1.msra.mxu0 %v540
      %568 = vmatprep.subr.mxu0 0.0
      %569 = vmatpush1.msra.mxu0 %v539
      %570 = vmatprep.subr.mxu0 0.0
      %571 = vmatpush1.msra.mxu0 %v538
      %572 = vmatprep.subr.mxu0 0.0
      %573 = vmatpush1.msra.mxu0 %v537
      %574 = vmatprep.subr.mxu0 0.0
      %575 = vmatpush1.msra.mxu0 %v536
      %576 = vmatprep.subr.mxu0 0.0
      %577 = vmatpush1.msra.mxu0 %v535
      %578 = vmatprep.subr.mxu0 0.0
      %579 = vmatpush1.msra.mxu0 %v534
      %580 = vmatprep.subr.mxu0 0.0
      %581 = vmatpush1.msra.mxu0 %v533
      %582 = vmatprep.subr.mxu0 0.0
      %583 = vmatpush1.msra.mxu0 %v532
      %584 = vmatprep.subr.mxu0 0.0
      %585 = vmatpush2.msra.mxu0 0.0
      %586 = vmatprep.subr.mxu0 0.0
      %587 = vmatpush2.msra.mxu0 0.0
      %588 = vmatprep.subr.mxu0 0.0
      %589 = vmatpush2.msra.mxu0 0.0
      %590 = vmatprep.subr.mxu0 0.0
      %591 = vmatpush2.msra.mxu0 0.0
      %592 = vmatprep.subr.mxu0 0.0
      %593 = vmatpush2.msra.mxu0 0.0
      %594 = vmatprep.subr.mxu0 0.0
      %595 = vmatpush2.msra.mxu0 0.0
      %596 = vmatprep.subr.mxu0 0.0
      %597 = vmatpush2.msra.mxu0 0.0
      %598 = vmatprep.subr.mxu0 0.0
      %599 = vmatpush2.msra.mxu0 0.0
      %600 = vmatprep.subr.mxu0 0.0
      %601 = vmatpush2.msra.mxu0 0.0
      %602 = vmatprep.subr.mxu0 0.0
      %603 = vmatpush2.msra.mxu0 0.0
      %604 = vmatprep.subr.mxu0 0.0
      %605 = vmatpush2.msra.mxu0 0.0
      %606 = vmatprep.subr.mxu0 0.0
      %607 = vmatpush2.msra.mxu0 0.0
      %608 = vmatprep.subr.mxu0 0.0
      %609 = vmatpush2.msra.mxu0 0.0
      %610 = vmatprep.subr.mxu0 0.0
      %611 = vmatpush2.msra.mxu0 0.0
      %612 = vmatprep.subr.mxu0 0.0
      %613 = vmatpush2.msra.mxu0 0.0
      %614 = vmatprep.subr.mxu0 0.0
      %615 = vmatpush2.msra.mxu0 0.0
      %616 = vmatprep.mubr.f32.mxu0 0.0
      %617 = vmatmul.mubr.f32.gmra.mxu0 %v516
      %v618 = vpop.f32.mrf.mxu0
      %v619 = vadd.f32 %v551, %v618
      %v620 = vpop.f32.mrf.mxu0
      %621 = vmatprep.mubr.f32.mxu0 0.0
      %622 = vmatmul.mubr.f32.gmra.mxu0 %v517
      %v623 = vpop.f32.mrf.mxu0
      %v624 = vadd.f32 %v551, %v623
      %v625 = vpop.f32.mrf.mxu0
      %626 = vmatprep.mubr.f32.mxu0 0.0
      %627 = vmatmul.mubr.f32.gmra.mxu0 %v518
      %v628 = vpop.f32.mrf.mxu0
      %v629 = vadd.f32 %v551, %v628
      %v630 = vpop.f32.mrf.mxu0
      %631 = vmatprep.mubr.f32.mxu0 0.0
      %632 = vmatmul.mubr.f32.gmra.mxu0 %v519
      %v633 = vpop.f32.mrf.mxu0
      %v634 = vadd.f32 %v551, %v633
      %v635 = vpop.f32.mrf.mxu0
      %636 = vmatprep.mubr.f32.mxu0 0.0
      %637 = vmatmul.mubr.f32.gmra.mxu0 %v520
      %v638 = vpop.f32.mrf.mxu0
      %v639 = vadd.f32 %v551, %v638
      %v640 = vpop.f32.mrf.mxu0
      %641 = vmatprep.mubr.f32.mxu0 0.0
      %642 = vmatmul.mubr.f32.gmra.mxu0 %v521
      %v643 = vpop.f32.mrf.mxu0
      %v644 = vadd.f32 %v551, %v643
      %v645 = vpop.f32.mrf.mxu0
      %646 = vmatprep.mubr.f32.mxu0 0.0
      %647 = vmatmul.mubr.f32.gmra.mxu0 %v522
      %v648 = vpop.f32.mrf.mxu0
      %v649 = vadd.f32 %v551, %v648
      %v650 = vpop.f32.mrf.mxu0
      %651 = vmatprep.mubr.f32.mxu0 0.0
      %652 = vmatmul.mubr.f32.gmra.mxu0 %v523
      %v653 = vpop.f32.mrf.mxu0
      %v654 = vadd.f32 %v551, %v653
      %v655 = vpop.f32.mrf.mxu0
      %656 = vmatprep.mubr.f32.mxu0 0.0
      %657 = vmatmul.mubr.f32.gmra.mxu0 %v524
      %v658 = vpop.f32.mrf.mxu0
      %v659 = vadd.f32 %v551, %v658
      %v660 = vpop.f32.mrf.mxu0
      %661 = vmatprep.mubr.f32.mxu0 0.0
      %662 = vmatmul.mubr.f32.gmra.mxu0 %v525
      %v663 = vpop.f32.mrf.mxu0
      %v664 = vadd.f32 %v551, %v663
      %v665 = vpop.f32.mrf.mxu0
      %666 = vmatprep.mubr.f32.mxu0 0.0
      %667 = vmatmul.mubr.f32.gmra.mxu0 %v526
      %v668 = vpop.f32.mrf.mxu0
      %v669 = vadd.f32 %v551, %v668
      %v670 = vpop.f32.mrf.mxu0
      %671 = vmatprep.mubr.f32.mxu0 0.0
      %672 = vmatmul.mubr.f32.gmra.mxu0 %v527
      %v673 = vpop.f32.mrf.mxu0
      %v674 = vadd.f32 %v551, %v673
      %v675 = vpop.f32.mrf.mxu0
      %676 = vmatprep.mubr.f32.mxu0 0.0
      %677 = vmatmul.mubr.f32.gmra.mxu0 %v528
      %v678 = vpop.f32.mrf.mxu0
      %v679 = vadd.f32 %v551, %v678
      %v680 = vpop.f32.mrf.mxu0
      %681 = vmatprep.mubr.f32.mxu0 0.0
      %682 = vmatmul.mubr.f32.gmra.mxu0 %v529
      %v683 = vpop.f32.mrf.mxu0
      %v684 = vadd.f32 %v551, %v683
      %v685 = vpop.f32.mrf.mxu0
      %686 = vmatprep.mubr.f32.mxu0 0.0
      %687 = vmatmul.mubr.f32.gmra.mxu0 %v530
      %v688 = vpop.f32.mrf.mxu0
      %v689 = vadd.f32 %v551, %v688
      %v690 = vpop.f32.mrf.mxu0
      %691 = vmatprep.mubr.f32.mxu0 0.0
      %692 = vmatmul.mubr.f32.gmra.mxu0 %v531
      %v693 = vpop.f32.mrf.mxu0
      %v694 = vadd.f32 %v551, %v693
      %v695 = vpop.f32.mrf.mxu0
      %696 = vdwg.mxu0
      %v697 = vmax.f32 %v619, 0.0
      %v698 = vmax.f32 %v624, 0.0
      %v699 = vmax.f32 %v629, 0.0
      %v700 = vmax.f32 %v634, 0.0
      %v701 = vmax.f32 %v639, 0.0
      %v702 = vmax.f32 %v644, 0.0
      %v703 = vmax.f32 %v649, 0.0
      %v704 = vmax.f32 %v654, 0.0
      %v705 = vmax.f32 %v659, 0.0
      %v706 = vmax.f32 %v664, 0.0
      %v707 = vmax.f32 %v669, 0.0
      %v708 = vmax.f32 %v674, 0.0
      %v709 = vmax.f32 %v679, 0.0
      %v710 = vmax.f32 %v684, 0.0
      %v711 = vmax.f32 %v689, 0.0
      %v712 = vmax.f32 %v694, 0.0
      %v713 = vld [vmem:[%s3] sm:$0xff]
      %v714 = vld [vmem:[%s3 + $0x8] sm:$0xff]
      %v715 = vld [vmem:[%s3 + $0x10] sm:$0xff]
      %v716 = vld [vmem:[%s3 + $0x18] sm:$0xff]
      %v717 = vld [vmem:[%s3 + $0x20] sm:$0xff]
      %v718 = vld [vmem:[%s3 + $0x28] sm:$0xff]
      %v719 = vld [vmem:[%s3 + $0x30] sm:$0xff]
      %v720 = vld [vmem:[%s3 + $0x38] sm:$0xff]
      %v721 = vlaneseq
      %v722 = vshrl.u32 %v721, 7
      %v723 = vsub.s32 0, %v722
      %v724 = vrot.slane %v282, %v723
      %vm725 = vcmask 523264
      %v727 = vsel %vm725, %v697, 0
      %v730 = vsel %vm725, %v698, 0
      %v733 = vsel %vm725, %v699, 0
      %v736 = vsel %vm725, %v700, 0
      %v739 = vsel %vm725, %v701, 0
      %v742 = vsel %vm725, %v702, 0
      %v745 = vsel %vm725, %v703, 0
      %v748 = vsel %vm725, %v704, 0
      %v751 = vsel %vm725, %v705, 0
      %v754 = vsel %vm725, %v706, 0
      %v757 = vsel %vm725, %v707, 0
      %v760 = vsel %vm725, %v708, 0
      %v763 = vsel %vm725, %v709, 0
      %v766 = vsel %vm725, %v710, 0
      %v769 = vsel %vm725, %v711, 0
      %v772 = vsel %vm725, %v712, 0
      %774 = vmatprep.subr.mxu0 0.0
      %775 = vmatpush1.msra.mxu0 0.0
      %776 = vmatprep.subr.mxu0 0.0
      %777 = vmatpush1.msra.mxu0 0.0
      %778 = vmatprep.subr.mxu0 0.0
      %779 = vmatpush1.msra.mxu0 0.0
      %780 = vmatprep.subr.mxu0 0.0
      %781 = vmatpush1.msra.mxu0 0.0
      %782 = vmatprep.subr.mxu0 0.0
      %783 = vmatpush1.msra.mxu0 0.0
      %784 = vmatprep.subr.mxu0 0.0
      %785 = vmatpush1.msra.mxu0 0.0
      %786 = vmatprep.subr.mxu0 0.0
      %787 = vmatpush1.msra.mxu0 0.0
      %788 = vmatprep.subr.mxu0 0.0
      %789 = vmatpush1.msra.mxu0 0.0
      %790 = vmatprep.subr.mxu0 0.0
      %791 = vmatpush1.msra.mxu0 %v720
      %792 = vmatprep.subr.mxu0 0.0
      %793 = vmatpush1.msra.mxu0 %v719
      %794 = vmatprep.subr.mxu0 0.0
      %795 = vmatpush1.msra.mxu0 %v718
      %796 = vmatprep.subr.mxu0 0.0
      %797 = vmatpush1.msra.mxu0 %v717
      %798 = vmatprep.subr.mxu0 0.0
      %799 = vmatpush1.msra.mxu0 %v716
      %800 = vmatprep.subr.mxu0 0.0
      %801 = vmatpush1.msra.mxu0 %v715
      %802 = vmatprep.subr.mxu0 0.0
      %803 = vmatpush1.msra.mxu0 %v714
      %804 = vmatprep.subr.mxu0 0.0
      %805 = vmatpush1.msra.mxu0 %v713
      %806 = vmatprep.subr.mxu0 0.0
      %807 = vmatpush2.msra.mxu0 0.0
      %808 = vmatprep.subr.mxu0 0.0
      %809 = vmatpush2.msra.mxu0 0.0
      %810 = vmatprep.subr.mxu0 0.0
      %811 = vmatpush2.msra.mxu0 0.0
      %812 = vmatprep.subr.mxu0 0.0
      %813 = vmatpush2.msra.mxu0 0.0
      %814 = vmatprep.subr.mxu0 0.0
      %815 = vmatpush2.msra.mxu0 0.0
      %816 = vmatprep.subr.mxu0 0.0
      %817 = vmatpush2.msra.mxu0 0.0
      %818 = vmatprep.subr.mxu0 0.0
      %819 = vmatpush2.msra.mxu0 0.0
      %820 = vmatprep.subr.mxu0 0.0
      %821 = vmatpush2.msra.mxu0 0.0
      %822 = vmatprep.subr.mxu0 0.0
      %823 = vmatpush2.msra.mxu0 0.0
      %824 = vmatprep.subr.mxu0 0.0
      %825 = vmatpush2.msra.mxu0 0.0
      %826 = vmatprep.subr.mxu0 0.0
      %827 = vmatpush2.msra.mxu0 0.0
      %828 = vmatprep.subr.mxu0 0.0
      %829 = vmatpush2.msra.mxu0 0.0
      %830 = vmatprep.subr.mxu0 0.0
      %831 = vmatpush2.msra.mxu0 0.0
      %832 = vmatprep.subr.mxu0 0.0
      %833 = vmatpush2.msra.mxu0 0.0
      %834 = vmatprep.subr.mxu0 0.0
      %835 = vmatpush2.msra.mxu0 0.0
      %836 = vmatprep.subr.mxu0 0.0
      %837 = vmatpush2.msra.mxu0 0.0
      %838 = vmatprep.mubr.f32.mxu0 0.0
      %839 = vmatmul.mubr.f32.gmra.mxu0 %v727
      %v840 = vpop.f32.mrf.mxu0
      %v841 = vadd.f32 %v724, %v840
      %v842 = vpop.f32.mrf.mxu0
      %843 = vmatprep.mubr.f32.mxu0 0.0
      %844 = vmatmul.mubr.f32.gmra.mxu0 %v730
      %v845 = vpop.f32.mrf.mxu0
      %v846 = vadd.f32 %v724, %v845
      %v847 = vpop.f32.mrf.mxu0
      %848 = vmatprep.mubr.f32.mxu0 0.0
      %849 = vmatmul.mubr.f32.gmra.mxu0 %v733
      %v850 = vpop.f32.mrf.mxu0
      %v851 = vadd.f32 %v724, %v850
      %v852 = vpop.f32.mrf.mxu0
      %853 = vmatprep.mubr.f32.mxu0 0.0
      %854 = vmatmul.mubr.f32.gmra.mxu0 %v736
      %v855 = vpop.f32.mrf.mxu0
      %v856 = vadd.f32 %v724, %v855
      %v857 = vpop.f32.mrf.mxu0
      %858 = vmatprep.mubr.f32.mxu0 0.0
      %859 = vmatmul.mubr.f32.gmra.mxu0 %v739
      %v860 = vpop.f32.mrf.mxu0
      %v861 = vadd.f32 %v724, %v860
      %v862 = vpop.f32.mrf.mxu0
      %863 = vmatprep.mubr.f32.mxu0 0.0
      %864 = vmatmul.mubr.f32.gmra.mxu0 %v742
      %v865 = vpop.f32.mrf.mxu0
      %v866 = vadd.f32 %v724, %v865
      %v867 = vpop.f32.mrf.mxu0
      %868 = vmatprep.mubr.f32.mxu0 0.0
      %869 = vmatmul.mubr.f32.gmra.mxu0 %v745
      %v870 = vpop.f32.mrf.mxu0
      %v871 = vadd.f32 %v724, %v870
      %v872 = vpop.f32.mrf.mxu0
      %873 = vmatprep.mubr.f32.mxu0 0.0
      %874 = vmatmul.mubr.f32.gmra.mxu0 %v748
      %v875 = vpop.f32.mrf.mxu0
      %v876 = vadd.f32 %v724, %v875
      %v877 = vpop.f32.mrf.mxu0
      %878 = vmatprep.mubr.f32.mxu0 0.0
      %879 = vmatmul.mubr.f32.gmra.mxu0 %v751
      %v880 = vpop.f32.mrf.mxu0
      %v881 = vadd.f32 %v724, %v880
      %v882 = vpop.f32.mrf.mxu0
      %883 = vmatprep.mubr.f32.mxu0 0.0
      %884 = vmatmul.mubr.f32.gmra.mxu0 %v754
      %v885 = vpop.f32.mrf.mxu0
      %v886 = vadd.f32 %v724, %v885
      %v887 = vpop.f32.mrf.mxu0
      %888 = vmatprep.mubr.f32.mxu0 0.0
      %889 = vmatmul.mubr.f32.gmra.mxu0 %v757
      %v890 = vpop.f32.mrf.mxu0
      %v891 = vadd.f32 %v724, %v890
      %v892 = vpop.f32.mrf.mxu0
      %893 = vmatprep.mubr.f32.mxu0 0.0
      %894 = vmatmul.mubr.f32.gmra.mxu0 %v760
      %v895 = vpop.f32.mrf.mxu0
      %v896 = vadd.f32 %v724, %v895
      %v897 = vpop.f32.mrf.mxu0
      %898 = vmatprep.mubr.f32.mxu0 0.0
      %899 = vmatmul.mubr.f32.gmra.mxu0 %v763
      %v900 = vpop.f32.mrf.mxu0
      %v901 = vadd.f32 %v724, %v900
      %v902 = vpop.f32.mrf.mxu0
      %903 = vmatprep.mubr.f32.mxu0 0.0
      %904 = vmatmul.mubr.f32.gmra.mxu0 %v766
      %v905 = vpop.f32.mrf.mxu0
      %v906 = vadd.f32 %v724, %v905
      %v907 = vpop.f32.mrf.mxu0
      %908 = vmatprep.mubr.f32.mxu0 0.0
      %909 = vmatmul.mubr.f32.gmra.mxu0 %v769
      %v910 = vpop.f32.mrf.mxu0
      %v911 = vadd.f32 %v724, %v910
      %v912 = vpop.f32.mrf.mxu0
      %913 = vmatprep.mubr.f32.mxu0 0.0
      %914 = vmatmul.mubr.f32.gmra.mxu0 %v772
      %v915 = vpop.f32.mrf.mxu0
      %v916 = vadd.f32 %v724, %v915
      %v917 = vpop.f32.mrf.mxu0
      %918 = vdwg.mxu0
      %v919 = vld [vmem:[%s4] sm:$0xff]
      %v920 = vld [vmem:[%s4 + $0x8] sm:$0xff]
      %v921 = vld [vmem:[%s4 + $0x10] sm:$0xff]
      %v922 = vld [vmem:[%s4 + $0x18] sm:$0xff]
      %v923 = vld [vmem:[%s4 + $0x20] sm:$0xff]
      %v924 = vld [vmem:[%s4 + $0x28] sm:$0xff]
      %v925 = vld [vmem:[%s4 + $0x30] sm:$0xff]
      %v926 = vld [vmem:[%s4 + $0x38] sm:$0xff]
      %v927 = vlaneseq
      %v928 = vshrl.u32 %v927, 7
      %v929 = vsub.s32 0, %v928
      %v930 = vrot.slane %v283, %v929
      %v932 = vsel %vm725, %v841, 0
      %v935 = vsel %vm725, %v846, 0
      %v938 = vsel %vm725, %v851, 0
      %v941 = vsel %vm725, %v856, 0
      %v944 = vsel %vm725, %v861, 0
      %v947 = vsel %vm725, %v866, 0
      %v950 = vsel %vm725, %v871, 0
      %v953 = vsel %vm725, %v876, 0
      %v956 = vsel %vm725, %v881, 0
      %v959 = vsel %vm725, %v886, 0
      %v962 = vsel %vm725, %v891, 0
      %v965 = vsel %vm725, %v896, 0
      %v968 = vsel %vm725, %v901, 0
      %v971 = vsel %vm725, %v906, 0
      %v974 = vsel %vm725, %v911, 0
      %v977 = vsel %vm725, %v916, 0
      %979 = vmatprep.subr.mxu0 0.0
      %980 = vmatpush1.msra.mxu0 0.0
      %981 = vmatprep.subr.mxu0 0.0
      %982 = vmatpush1.msra.mxu0 0.0
      %983 = vmatprep.subr.mxu0 0.0
      %984 = vmatpush1.msra.mxu0 0.0
      %985 = vmatprep.subr.mxu0 0.0
      %986 = vmatpush1.msra.mxu0 0.0
      %987 = vmatprep.subr.mxu0 0.0
      %988 = vmatpush1.msra.mxu0 0.0
      %989 = vmatprep.subr.mxu0 0.0
      %990 = vmatpush1.msra.mxu0 0.0
      %991 = vmatprep.subr.mxu0 0.0
      %992 = vmatpush1.msra.mxu0 0.0
      %993 = vmatprep.subr.mxu0 0.0
      %994 = vmatpush1.msra.mxu0 0.0
      %995 = vmatprep.subr.mxu0 0.0
      %996 = vmatpush1.msra.mxu0 %v926
      %997 = vmatprep.subr.mxu0 0.0
      %998 = vmatpush1.msra.mxu0 %v925
      %999 = vmatprep.subr.mxu0 0.0
      %1000 = vmatpush1.msra.mxu0 %v924
      %1001 = vmatprep.subr.mxu0 0.0
      %1002 = vmatpush1.msra.mxu0 %v923
      %1003 = vmatprep.subr.mxu0 0.0
      %1004 = vmatpush1.msra.mxu0 %v922
      %1005 = vmatprep.subr.mxu0 0.0
      %1006 = vmatpush1.msra.mxu0 %v921
      %1007 = vmatprep.subr.mxu0 0.0
      %1008 = vmatpush1.msra.mxu0 %v920
      %1009 = vmatprep.subr.mxu0 0.0
      %1010 = vmatpush1.msra.mxu0 %v919
      %1011 = vmatprep.subr.mxu0 0.0
      %1012 = vmatpush2.msra.mxu0 0.0
      %1013 = vmatprep.subr.mxu0 0.0
      %1014 = vmatpush2.msra.mxu0 0.0
      %1015 = vmatprep.subr.mxu0 0.0
      %1016 = vmatpush2.msra.mxu0 0.0
      %1017 = vmatprep.subr.mxu0 0.0
      %1018 = vmatpush2.msra.mxu0 0.0
      %1019 = vmatprep.subr.mxu0 0.0
      %1020 = vmatpush2.msra.mxu0 0.0
      %1021 = vmatprep.subr.mxu0 0.0
      %1022 = vmatpush2.msra.mxu0 0.0
      %1023 = vmatprep.subr.mxu0 0.0
      %1024 = vmatpush2.msra.mxu0 0.0
      %1025 = vmatprep.subr.mxu0 0.0
      %1026 = vmatpush2.msra.mxu0 0.0
      %1027 = vmatprep.subr.mxu0 0.0
      %1028 = vmatpush2.msra.mxu0 0.0
      %1029 = vmatprep.subr.mxu0 0.0
      %1030 = vmatpush2.msra.mxu0 0.0
      %1031 = vmatprep.subr.mxu0 0.0
      %1032 = vmatpush2.msra.mxu0 0.0
      %1033 = vmatprep.subr.mxu0 0.0
      %1034 = vmatpush2.msra.mxu0 0.0
      %1035 = vmatprep.subr.mxu0 0.0
      %1036 = vmatpush2.msra.mxu0 0.0
      %1037 = vmatprep.subr.mxu0 0.0
      %1038 = vmatpush2.msra.mxu0 0.0
      %1039 = vmatprep.subr.mxu0 0.0
      %1040 = vmatpush2.msra.mxu0 0.0
      %1041 = vmatprep.subr.mxu0 0.0
      %1042 = vmatpush2.msra.mxu0 0.0
      %1043 = vmatprep.mubr.f32.mxu0 0.0
      %1044 = vmatmul.mubr.f32.gmra.mxu0 %v932
      %v1045 = vpop.f32.mrf.mxu0
      %v1046 = vadd.f32 %v930, %v1045
      %v1047 = vpop.f32.mrf.mxu0
      %1048 = vmatprep.mubr.f32.mxu0 0.0
      %1049 = vmatmul.mubr.f32.gmra.mxu0 %v935
      %v1050 = vpop.f32.mrf.mxu0
      %v1051 = vadd.f32 %v930, %v1050
      %v1052 = vpop.f32.mrf.mxu0
      %1053 = vmatprep.mubr.f32.mxu0 0.0
      %1054 = vmatmul.mubr.f32.gmra.mxu0 %v938
      %v1055 = vpop.f32.mrf.mxu0
      %v1056 = vadd.f32 %v930, %v1055
      %v1057 = vpop.f32.mrf.mxu0
      %1058 = vmatprep.mubr.f32.mxu0 0.0
      %1059 = vmatmul.mubr.f32.gmra.mxu0 %v941
      %v1060 = vpop.f32.mrf.mxu0
      %v1061 = vadd.f32 %v930, %v1060
      %v1062 = vpop.f32.mrf.mxu0
      %1063 = vmatprep.mubr.f32.mxu0 0.0
      %1064 = vmatmul.mubr.f32.gmra.mxu0 %v944
      %v1065 = vpop.f32.mrf.mxu0
      %v1066 = vadd.f32 %v930, %v1065
      %v1067 = vpop.f32.mrf.mxu0
      %1068 = vmatprep.mubr.f32.mxu0 0.0
      %1069 = vmatmul.mubr.f32.gmra.mxu0 %v947
      %v1070 = vpop.f32.mrf.mxu0
      %v1071 = vadd.f32 %v930, %v1070
      %v1072 = vpop.f32.mrf.mxu0
      %1073 = vmatprep.mubr.f32.mxu0 0.0
      %1074 = vmatmul.mubr.f32.gmra.mxu0 %v950
      %v1075 = vpop.f32.mrf.mxu0
      %v1076 = vadd.f32 %v930, %v1075
      %v1077 = vpop.f32.mrf.mxu0
      %1078 = vmatprep.mubr.f32.mxu0 0.0
      %1079 = vmatmul.mubr.f32.gmra.mxu0 %v953
      %v1080 = vpop.f32.mrf.mxu0
      %v1081 = vadd.f32 %v930, %v1080
      %v1082 = vpop.f32.mrf.mxu0
      %1083 = vmatprep.mubr.f32.mxu0 0.0
      %1084 = vmatmul.mubr.f32.gmra.mxu0 %v956
      %v1085 = vpop.f32.mrf.mxu0
      %v1086 = vadd.f32 %v930, %v1085
      %v1087 = vpop.f32.mrf.mxu0
      %1088 = vmatprep.mubr.f32.mxu0 0.0
      %1089 = vmatmul.mubr.f32.gmra.mxu0 %v959
      %v1090 = vpop.f32.mrf.mxu0
      %v1091 = vadd.f32 %v930, %v1090
      %v1092 = vpop.f32.mrf.mxu0
      %1093 = vmatprep.mubr.f32.mxu0 0.0
      %1094 = vmatmul.mubr.f32.gmra.mxu0 %v962
      %v1095 = vpop.f32.mrf.mxu0
      %v1096 = vadd.f32 %v930, %v1095
      %v1097 = vpop.f32.mrf.mxu0
      %1098 = vmatprep.mubr.f32.mxu0 0.0
      %1099 = vmatmul.mubr.f32.gmra.mxu0 %v965
      %v1100 = vpop.f32.mrf.mxu0
      %v1101 = vadd.f32 %v930, %v1100
      %v1102 = vpop.f32.mrf.mxu0
      %1103 = vmatprep.mubr.f32.mxu0 0.0
      %1104 = vmatmul.mubr.f32.gmra.mxu0 %v968
      %v1105 = vpop.f32.mrf.mxu0
      %v1106 = vadd.f32 %v930, %v1105
      %v1107 = vpop.f32.mrf.mxu0
      %1108 = vmatprep.mubr.f32.mxu0 0.0
      %1109 = vmatmul.mubr.f32.gmra.mxu0 %v971
      %v1110 = vpop.f32.mrf.mxu0
      %v1111 = vadd.f32 %v930, %v1110
      %v1112 = vpop.f32.mrf.mxu0
      %1113 = vmatprep.mubr.f32.mxu0 0.0
      %1114 = vmatmul.mubr.f32.gmra.mxu0 %v974
      %v1115 = vpop.f32.mrf.mxu0
      %v1116 = vadd.f32 %v930, %v1115
      %v1117 = vpop.f32.mrf.mxu0
      %1118 = vmatprep.mubr.f32.mxu0 0.0
      %1119 = vmatmul.mubr.f32.gmra.mxu0 %v977
      %v1120 = vpop.f32.mrf.mxu0
      %v1121 = vadd.f32 %v930, %v1120
      %v1122 = vpop.f32.mrf.mxu0
      %1123 = vdwg.mxu0
      %v1124 = vmax.f32 %v1046, 0.0
      %v1125 = vmax.f32 %v1051, 0.0
      %v1126 = vmax.f32 %v1056, 0.0
      %v1127 = vmax.f32 %v1061, 0.0
      %v1128 = vmax.f32 %v1066, 0.0
      %v1129 = vmax.f32 %v1071, 0.0
      %v1130 = vmax.f32 %v1076, 0.0
      %v1131 = vmax.f32 %v1081, 0.0
      %v1132 = vmax.f32 %v1086, 0.0
      %v1133 = vmax.f32 %v1091, 0.0
      %v1134 = vmax.f32 %v1096, 0.0
      %v1135 = vmax.f32 %v1101, 0.0
      %v1136 = vmax.f32 %v1106, 0.0
      %v1137 = vmax.f32 %v1111, 0.0
      %v1138 = vmax.f32 %v1116, 0.0
      %v1139 = vmax.f32 %v1121, 0.0
      %v1140 = vadd.f32 %v841, %v1124
      %v1141 = vadd.f32 %v846, %v1125
      %v1142 = vadd.f32 %v851, %v1126
      %v1143 = vadd.f32 %v856, %v1127
      %v1144 = vadd.f32 %v861, %v1128
      %v1145 = vadd.f32 %v866, %v1129
      %v1146 = vadd.f32 %v871, %v1130
      %v1147 = vadd.f32 %v876, %v1131
      %v1148 = vadd.f32 %v881, %v1132
      %v1149 = vadd.f32 %v886, %v1133
      %v1150 = vadd.f32 %v891, %v1134
      %v1151 = vadd.f32 %v896, %v1135
      %v1152 = vadd.f32 %v901, %v1136
      %v1153 = vadd.f32 %v906, %v1137
      %v1154 = vadd.f32 %v911, %v1138
      %v1155 = vadd.f32 %v916, %v1139
      %v1156 = vlaneseq
      %v1157 = vshrl.u32 %v1156, 7
      %v1158 = vsub.s32 0, %v1157
      %v1159 = vrot.slane %v284, %v1158
      %v1160 = vmul.f32 %v841, %v1159
      %v1161 = vmul.f32 %v846, %v1159
      %v1162 = vmul.f32 %v851, %v1159
      %v1163 = vmul.f32 %v856, %v1159
      %v1164 = vmul.f32 %v861, %v1159
      %v1165 = vmul.f32 %v866, %v1159
      %v1166 = vmul.f32 %v871, %v1159
      %v1167 = vmul.f32 %v876, %v1159
      %v1168 = vmul.f32 %v881, %v1159
      %v1169 = vmul.f32 %v886, %v1159
      %v1170 = vmul.f32 %v891, %v1159
      %v1171 = vmul.f32 %v896, %v1159
      %v1172 = vmul.f32 %v901, %v1159
      %v1173 = vmul.f32 %v906, %v1159
      %v1174 = vmul.f32 %v911, %v1159
      %v1175 = vmul.f32 %v916, %v1159
      %v1176 = vlaneseq
      %v1177 = vshrl.u32 %v1176, 7
      %v1178 = vsub.s32 0, %v1177
      %v1179 = vrot.slane %v285, %v1178
      %v1180 = vadd.f32 %v1160, %v1179
      %v1181 = vadd.f32 %v1161, %v1179
      %v1182 = vadd.f32 %v1162, %v1179
      %v1183 = vadd.f32 %v1163, %v1179
      %v1184 = vadd.f32 %v1164, %v1179
      %v1185 = vadd.f32 %v1165, %v1179
      %v1186 = vadd.f32 %v1166, %v1179
      %v1187 = vadd.f32 %v1167, %v1179
      %v1188 = vadd.f32 %v1168, %v1179
      %v1189 = vadd.f32 %v1169, %v1179
      %v1190 = vadd.f32 %v1170, %v1179
      %v1191 = vadd.f32 %v1171, %v1179
      %v1192 = vadd.f32 %v1172, %v1179
      %v1193 = vadd.f32 %v1173, %v1179
      %v1194 = vadd.f32 %v1174, %v1179
      %v1195 = vadd.f32 %v1175, %v1179
      %v1196 = vmax.f32 %v1180, 0.0
      %v1197 = vmax.f32 %v1181, 0.0
      %v1198 = vmax.f32 %v1182, 0.0
      %v1199 = vmax.f32 %v1183, 0.0
      %v1200 = vmax.f32 %v1184, 0.0
      %v1201 = vmax.f32 %v1185, 0.0
      %v1202 = vmax.f32 %v1186, 0.0
      %v1203 = vmax.f32 %v1187, 0.0
      %v1204 = vmax.f32 %v1188, 0.0
      %v1205 = vmax.f32 %v1189, 0.0
      %v1206 = vmax.f32 %v1190, 0.0
      %v1207 = vmax.f32 %v1191, 0.0
      %v1208 = vmax.f32 %v1192, 0.0
      %v1209 = vmax.f32 %v1193, 0.0
      %v1210 = vmax.f32 %v1194, 0.0
      %v1211 = vmax.f32 %v1195, 0.0
      %v1212 = vmul.f32 %v1140, %v1159
      %v1213 = vmul.f32 %v1141, %v1159
      %v1214 = vmul.f32 %v1142, %v1159
      %v1215 = vmul.f32 %v1143, %v1159
      %v1216 = vmul.f32 %v1144, %v1159
      %v1217 = vmul.f32 %v1145, %v1159
      %v1218 = vmul.f32 %v1146, %v1159
      %v1219 = vmul.f32 %v1147, %v1159
      %v1220 = vmul.f32 %v1148, %v1159
      %v1221 = vmul.f32 %v1149, %v1159
      %v1222 = vmul.f32 %v1150, %v1159
      %v1223 = vmul.f32 %v1151, %v1159
      %v1224 = vmul.f32 %v1152, %v1159
      %v1225 = vmul.f32 %v1153, %v1159
      %v1226 = vmul.f32 %v1154, %v1159
      %v1227 = vmul.f32 %v1155, %v1159
      %v1228 = vadd.f32 %v1212, %v1179
      %v1229 = vadd.f32 %v1213, %v1179
      %v1230 = vadd.f32 %v1214, %v1179
      %v1231 = vadd.f32 %v1215, %v1179
      %v1232 = vadd.f32 %v1216, %v1179
      %v1233 = vadd.f32 %v1217, %v1179
      %v1234 = vadd.f32 %v1218, %v1179
      %v1235 = vadd.f32 %v1219, %v1179
      %v1236 = vadd.f32 %v1220, %v1179
      %v1237 = vadd.f32 %v1221, %v1179
      %v1238 = vadd.f32 %v1222, %v1179
      %v1239 = vadd.f32 %v1223, %v1179
      %v1240 = vadd.f32 %v1224, %v1179
      %v1241 = vadd.f32 %v1225, %v1179
      %v1242 = vadd.f32 %v1226, %v1179
      %v1243 = vadd.f32 %v1227, %v1179
      %v1244 = vmax.f32 %v1228, 0.0
      %v1245 = vmax.f32 %v1229, 0.0
      %v1246 = vmax.f32 %v1230, 0.0
      %v1247 = vmax.f32 %v1231, 0.0
      %v1248 = vmax.f32 %v1232, 0.0
      %v1249 = vmax.f32 %v1233, 0.0
      %v1250 = vmax.f32 %v1234, 0.0
      %v1251 = vmax.f32 %v1235, 0.0
      %v1252 = vmax.f32 %v1236, 0.0
      %v1253 = vmax.f32 %v1237, 0.0
      %v1254 = vmax.f32 %v1238, 0.0
      %v1255 = vmax.f32 %v1239, 0.0
      %v1256 = vmax.f32 %v1240, 0.0
      %v1257 = vmax.f32 %v1241, 0.0
      %v1258 = vmax.f32 %v1242, 0.0
      %v1259 = vmax.f32 %v1243, 0.0
      %v1260 = vadd.f32 %v1196, %v1244
      %v1261 = vadd.f32 %v1197, %v1245
      %v1262 = vadd.f32 %v1198, %v1246
      %v1263 = vadd.f32 %v1199, %v1247
      %v1264 = vadd.f32 %v1200, %v1248
      %v1265 = vadd.f32 %v1201, %v1249
      %v1266 = vadd.f32 %v1202, %v1250
      %v1267 = vadd.f32 %v1203, %v1251
      %v1268 = vadd.f32 %v1204, %v1252
      %v1269 = vadd.f32 %v1205, %v1253
      %v1270 = vadd.f32 %v1206, %v1254
      %v1271 = vadd.f32 %v1207, %v1255
      %v1272 = vadd.f32 %v1208, %v1256
      %v1273 = vadd.f32 %v1209, %v1257
      %v1274 = vadd.f32 %v1210, %v1258
      %v1275 = vadd.f32 %v1211, %v1259
      %v1276 = vld [vmem:[%s5] sm:$0xff]
      %v1278 = vsel %vm725, %v1276, 0
      %v1281 = vsel %vm725, %v1260, 0
      %v1284 = vsel %vm725, %v1261, 0
      %v1287 = vsel %vm725, %v1262, 0
      %v1290 = vsel %vm725, %v1263, 0
      %v1293 = vsel %vm725, %v1264, 0
      %v1296 = vsel %vm725, %v1265, 0
      %v1299 = vsel %vm725, %v1266, 0
      %v1302 = vsel %vm725, %v1267, 0
      %v1305 = vsel %vm725, %v1268, 0
      %v1308 = vsel %vm725, %v1269, 0
      %v1311 = vsel %vm725, %v1270, 0
      %v1314 = vsel %vm725, %v1271, 0
      %v1317 = vsel %vm725, %v1272, 0
      %v1320 = vsel %vm725, %v1273, 0
      %v1323 = vsel %vm725, %v1274, 0
      %v1326 = vsel %vm725, %v1275, 0
      %1328 = vmatprep.subr.mxu0 0.0
      %1329 = vmatpush1.xpose.msra.mxu0 %v1326
      %1330 = vmatprep.subr.mxu0 0.0
      %1331 = vmatpush1.xpose.msra.mxu0 %v1323
      %1332 = vmatprep.subr.mxu0 0.0
      %1333 = vmatpush1.xpose.msra.mxu0 %v1320
      %1334 = vmatprep.subr.mxu0 0.0
      %1335 = vmatpush1.xpose.msra.mxu0 %v1317
      %1336 = vmatprep.subr.mxu0 0.0
      %1337 = vmatpush1.xpose.msra.mxu0 %v1314
      %1338 = vmatprep.subr.mxu0 0.0
      %1339 = vmatpush1.xpose.msra.mxu0 %v1311
      %1340 = vmatprep.subr.mxu0 0.0
      %1341 = vmatpush1.xpose.msra.mxu0 %v1308
      %1342 = vmatprep.subr.mxu0 0.0
      %1343 = vmatpush1.xpose.msra.mxu0 %v1305
      %1344 = vmatprep.subr.mxu0 0.0
      %1345 = vmatpush1.xpose.msra.mxu0 %v1302
      %1346 = vmatprep.subr.mxu0 0.0
      %1347 = vmatpush1.xpose.msra.mxu0 %v1299
      %1348 = vmatprep.subr.mxu0 0.0
      %1349 = vmatpush1.xpose.msra.mxu0 %v1296
      %1350 = vmatprep.subr.mxu0 0.0
      %1351 = vmatpush1.xpose.msra.mxu0 %v1293
      %1352 = vmatprep.subr.mxu0 0.0
      %1353 = vmatpush1.xpose.msra.mxu0 %v1290
      %1354 = vmatprep.subr.mxu0 0.0
      %1355 = vmatpush1.xpose.msra.mxu0 %v1287
      %1356 = vmatprep.subr.mxu0 0.0
      %1357 = vmatpush1.xpose.msra.mxu0 %v1284
      %1358 = vmatprep.subr.mxu0 0.0
      %1359 = vmatpush1.xpose.msra.mxu0 %v1281
      %1360 = vmatprep.subr.mxu0 0.0
      %1361 = vmatpush2.xpose.msra.mxu0 0.0
      %1362 = vmatprep.subr.mxu0 0.0
      %1363 = vmatpush2.xpose.msra.mxu0 0.0
      %1364 = vmatprep.subr.mxu0 0.0
      %1365 = vmatpush2.xpose.msra.mxu0 0.0
      %1366 = vmatprep.subr.mxu0 0.0
      %1367 = vmatpush2.xpose.msra.mxu0 0.0
      %1368 = vmatprep.subr.mxu0 0.0
      %1369 = vmatpush2.xpose.msra.mxu0 0.0
      %1370 = vmatprep.subr.mxu0 0.0
      %1371 = vmatpush2.xpose.msra.mxu0 0.0
      %1372 = vmatprep.subr.mxu0 0.0
      %1373 = vmatpush2.xpose.msra.mxu0 0.0
      %1374 = vmatprep.subr.mxu0 0.0
      %1375 = vmatpush2.xpose.msra.mxu0 0.0
      %1376 = vmatprep.subr.mxu0 0.0
      %1377 = vmatpush2.xpose.msra.mxu0 0.0
      %1378 = vmatprep.subr.mxu0 0.0
      %1379 = vmatpush2.xpose.msra.mxu0 0.0
      %1380 = vmatprep.subr.mxu0 0.0
      %1381 = vmatpush2.xpose.msra.mxu0 0.0
      %1382 = vmatprep.subr.mxu0 0.0
      %1383 = vmatpush2.xpose.msra.mxu0 0.0
      %1384 = vmatprep.subr.mxu0 0.0
      %1385 = vmatpush2.xpose.msra.mxu0 0.0
      %1386 = vmatprep.subr.mxu0 0.0
      %1387 = vmatpush2.xpose.msra.mxu0 0.0
      %1388 = vmatprep.subr.mxu0 0.0
      %1389 = vmatpush2.xpose.msra.mxu0 0.0
      %1390 = vmatprep.subr.mxu0 0.0
      %1391 = vmatpush2.xpose.msra.mxu0 0.0
      %1392 = vmatprep.mubr.f32.mxu0 0.0
      %1393 = vmatmul.mubr.f32.gmra.mxu0 %v1278
      %v1394 = vpop.f32.mrf.mxu0
      %v1395 = vadd.f32 0.0, %v1394
      %v1396 = vpop.f32.mrf.mxu0
      %1397 = vdwg.mxu0
      %1398 = vst [vmem:[%s278] sm:$0x3] %v1395
      %p1399 = scmp.lt.s32.totalorder %s18, 3
      %s1400 = scalar_select %p1399, %s18, 3
      %s1401 = smul.addr %s1400, 2
      %s1402 = scalar_lea.vmem %s7, %s1401
      // Predicated region
      $region49: #{gesanet_forward.1} parent=47 // pred_check
        %p1403 = pneg %p188
      $region50: #{gesanet_forward.1} parent=47 // pred_check_branch
        %1405 = sbr.rel (%p1403) target = $region52
      $region51: #{gesanet_forward.1} parent=47 // pred_region
        _
      $region52: #{gesanet_forward.1} parent=47 // pred_fallthru
        _
    $region48: #{gesanet_forward.1} parent=5 // pred_fallthru
      _
    %p1406 = scmp.le.s32.totalorder 2, %s13
    // Predicated region
    $region53: #{gesanet_forward.1} parent=5 // pred_check
      %p1407 = pneg %p1406
    $region54: #{gesanet_forward.1} parent=5 // pred_check_branch
      %1409 = sbr.rel (%p1407) target = $region56
    $region55: #{gesanet_forward.1} parent=5 // pred_region
      %s1410 = ssub.s32 %s13, 2
      // Predicated region
      $region57: #{gesanet_forward.1} parent=55 // pred_check
        %p1411 = pneg %p194
      $region58: #{gesanet_forward.1} parent=55 // pred_check_branch
        %1413 = sbr.rel (%p1411) target = $region60
      $region59: #{gesanet_forward.1} parent=55 // pred_region
        %p1414 = scmp.lt.s32.totalorder %s19, 3
        %s1415 = scalar_select %p1414, %s19, 3
        %s1416 = smul.addr %s1415, 2
        %s1417 = scalar_lea.vmem %s7, %s1416
      $region60: #{gesanet_forward.1} parent=55 // pred_fallthru
        _
    $region56: #{gesanet_forward.1} parent=5 // pred_fallthru
      _
  $region6: #{gesanet_forward.1} parent=0 // loop_footer
    %s17 = sadd.s32 1, %s13
  $region7: #{gesanet_forward.1} parent=0 // loop_footer_branch
    %12 = sbr.rel target = $region3
  $region8: #{gesanet_forward.1} parent=0 // loop_exit
    _

</llo_original>
